<compile_context>
chip_gen: v5e
topology: v5e:2x2
jax: 0.10.0
libtpu: 0.0.40
codegen_flags: <defaults>
</compile_context>

<pallas_src>
import functools

import jax
import jax.numpy as jnp
from jax import lax
from jax.experimental import pallas as pl
from jax.experimental.pallas import tpu as pltpu

BN_EPS = 1e-5


def convhead_kernel(x_ref, w1_ref, b1_ref, ml_ref, mr_ref, w2_ref, b2_ref,
                    o_ref, pad_ref, col_ref, *, H, W, B_blk, LPAD):
    # x_ref  : (B_blk, Cin, HW)      f32   raw flattened activations (cast in-kernel)
    # w1_ref : (Cin, 9*Cin)          bf16  3x3 weights, columns ordered (kh, kw, ci)
    # b1_ref : (Cin, 1)              f32   conv1 bias
    # ml_ref : (1, HW)               bf16  0 where w == 0,    else 1
    # mr_ref : (1, HW)               bf16  0 where w == W-1,  else 1
    # w2_ref : (Cout, Cin)           bf16  1x1 weights with BN scale folded in
    # b2_ref : (Cout, 1)             f32   1x1 bias with BN shift folded in
    # o_ref  : (B_blk, Cout, HW)     f32   lane-dense output
    # pad_ref: (Cin, P)              bf16  scratch zero-padded flat image
    # col_ref: (9*Cin, B_blk*HW)     bf16  scratch im2col matrix
    Cin = x_ref.shape[1]
    HW = H * W

    # Zero the padded scratch every step (few KB of VMEM stores).  NOTE: not
    # gated on program_id == 0 — with a "parallel" grid axis a v7x core may
    # never execute step 0, so per-step init is the portable choice.
    pad_ref[...] = jnp.zeros_like(pad_ref)

    # Hoisted sublane-broadcast of the W-boundary masks: (1, HW) -> (Cin, HW).
    m_left = jnp.broadcast_to(ml_ref[...], (Cin, HW))
    m_right = jnp.broadcast_to(mr_ref[...], (Cin, HW))

    base = LPAD - (W + 1)          # tap (kh, kw) starts at base + kh*W + kw
    for b in range(B_blk):
        # Fused f32 -> bf16 cast; interior store is lane-aligned (LPAD % 128 == 0).
        pad_ref[:, LPAD:LPAD + HW] = x_ref[b].astype(jnp.bfloat16)

        # im2col: row block t = kh*3+kw holds x[ci, h+kh-1, w+kw-1].  Each tap
        # is a contiguous static lane-slice of the padded flat image; the H
        # boundary is covered by the zero pad, the W boundary by the bf16 mask
        # multiplies on the kw==0 / kw==2 taps.
        for kh in range(3):
            for kw in range(3):
                t = kh * 3 + kw
                start = base + kh * W + kw              # static Python int
                tap = pad_ref[:, start:start + HW]      # (Cin, HW) bf16
                if kw == 0:
                    tap = tap * m_left
                elif kw == 2:
                    tap = tap * m_right
                col_ref[t * Cin:(t + 1) * Cin, b * HW:(b + 1) * HW] = tap

    # 3x3 conv for all B_blk images as a single deep-K MXU matmul, f32 acc.
    acc = jnp.dot(w1_ref[...], col_ref[...], preferred_element_type=jnp.float32)

    # Bias + ReLU in f32 (BatchNorm already folded into w2/b2 in the wrapper).
    h = jnp.maximum(acc + b1_ref[...], 0.0)             # (Cin, B_blk*HW) f32

    # 1x1 conv (+ folded BN affine), bf16 operands / f32 accumulation.
    out = jnp.dot(w2_ref[...], h.astype(jnp.bfloat16),
                  preferred_element_type=jnp.float32) + b2_ref[...]

    # Lane-dense (Cout, HW) stores, one slab per image (slice starts are
    # multiples of HW, i.e. lane-tile aligned -> unmasked vst).
    for b in range(B_blk):
        o_ref[b] = out[:, b * HW:(b + 1) * HW].astype(o_ref.dtype)


def _pick_batch_block(n):
    """Largest divisor of n that is <= min(8, n // 2): folds the batch while
    keeping >= 2 grid steps (so both v7x TensorCores stay busy)."""
    target = min(8, max(1, n // 2))
    for b in range(target, 0, -1):
        if n % b == 0:
            return b
    return 1


@jax.jit
def convhead_forward(x_nchw, w1, b1, gamma, beta, run_mean, run_var, w2, b2):
    """x_nchw: (N, Cin, H, W) float32. Returns (N, Cout, H, W) float32."""
    N, Cin, H, W = x_nchw.shape
    Cout = w2.shape[0]
    HW = H * W
    B_blk = _pick_batch_block(N)
    LPAD = ((W + 1 + 127) // 128) * 128      # 128-aligned left pad (>= W+1)
    P = LPAD + HW + (W + 1)                  # padded flat-spatial scratch length

    # Channel-major flatten (NCHW is already channel-major): free reshape,
    # no transpose, no pad, no dtype convert — those are fused into the kernel.
    xf = x_nchw.reshape(N, Cin, HW)

    # PyTorch (Cin, Cin, 3, 3) -> (Cin, 9*Cin), columns ordered (kh, kw, ci).
    w1mat = jnp.transpose(w1, (0, 2, 3, 1)).reshape(Cin, 9 * Cin).astype(jnp.bfloat16)
    b1_k = b1.reshape(Cin, 1).astype(jnp.float32)

    # Fold BatchNorm2d (inference: running stats) into the 1x1 conv.
    scale = gamma * lax.rsqrt(run_var + BN_EPS)       # (Cin,)
    shift = beta - run_mean * scale                   # (Cin,)
    w2m = w2[:, :, 0, 0]                              # (Cout, Cin)
    w2_k = (w2m * scale[None, :]).astype(jnp.bfloat16)            # bf16 MXU operand
    b2_k = (w2m @ shift + b2).reshape(Cout, 1).astype(jnp.float32)

    # Precomputed W-boundary masks (constant-folded by XLA; tiny resident input).
    lane_w = jnp.arange(HW, dtype=jnp.int32) % W
    m_left = (lane_w != 0).astype(jnp.bfloat16).reshape(1, HW)
    m_right = (lane_w != W - 1).astype(jnp.bfloat16).reshape(1, HW)

    kernel = functools.partial(convhead_kernel, H=H, W=W, B_blk=B_blk, LPAD=LPAD)

    out = pl.pallas_call(
        kernel,
        out_shape=jax.ShapeDtypeStruct((N, Cout, HW), jnp.float32),
        grid_spec=pltpu.PrefetchScalarGridSpec(
            num_scalar_prefetch=0,
            grid=(N // B_blk,),
            in_specs=[
                pl.BlockSpec((B_blk, Cin, HW), lambda b: (b, 0, 0)),
                pl.BlockSpec((Cin, 9 * Cin), lambda b: (0, 0)),
                pl.BlockSpec((Cin, 1), lambda b: (0, 0)),
                pl.BlockSpec((1, HW), lambda b: (0, 0)),
                pl.BlockSpec((1, HW), lambda b: (0, 0)),
                pl.BlockSpec((Cout, Cin), lambda b: (0, 0)),
                pl.BlockSpec((Cout, 1), lambda b: (0, 0)),
            ],
            out_specs=pl.BlockSpec((B_blk, Cout, HW), lambda b: (b, 0, 0)),
            scratch_shapes=[
                pltpu.VMEM((Cin, P), jnp.bfloat16),               # padded image
                pltpu.VMEM((9 * Cin, B_blk * HW), jnp.bfloat16),  # im2col matrix
            ],
        ),
        compiler_params=pltpu.CompilerParams(
            dimension_semantics=("parallel",)),
    )(xf, w1mat, b1_k, m_left, m_right, w2_k, b2_k)

    return out.reshape(N, Cout, H, W)                 # pure reshape, no transpose


def reference_forward(x_nchw, w1, b1, gamma, beta, run_mean, run_var, w2, b2):
    """Pure-JAX f32 reference mirroring PyTorch semantics (BN in eval mode)."""
    dn = lax.conv_dimension_numbers(x_nchw.shape, w1.shape, ("NCHW", "OIHW", "NCHW"))
    h = lax.conv_general_dilated(x_nchw, w1, (1, 1), ((1, 1), (1, 1)),
                                 dimension_numbers=dn)
    h = h + b1[None, :, None, None]
    h = jnp.maximum(h, 0.0)
    h = (h - run_mean[None, :, None, None]) * (
        gamma[None, :, None, None] * lax.rsqrt(run_var[None, :, None, None] + BN_EPS)
    ) + beta[None, :, None, None]
    dn2 = lax.conv_dimension_numbers(h.shape, w2.shape, ("NCHW", "OIHW", "NCHW"))
    o = lax.conv_general_dilated(h, w2, (1, 1), ((0, 0), (0, 0)),
                                 dimension_numbers=dn2)
    return o + b2[None, :, None, None]


if __name__ == "__main__":
    # Shapes consistent with ConvHead(out_channels=8, in_channels=32).
    Cin, Cout, H, W = 32, 8, 16, 16

    key = jax.random.PRNGKey(0)
    k = jax.random.split(key, 8)

    # Deterministic synthetic parameters.
    w1 = jax.random.normal(k[1], (Cin, Cin, 3, 3), dtype=jnp.float32) * 0.05
    b1 = jax.random.normal(k[2], (Cin,), dtype=jnp.float32) * 0.05
    gamma = 1.0 + 0.1 * jax.random.normal(k[3], (Cin,), dtype=jnp.float32)
    beta = 0.1 * jax.random.normal(k[4], (Cin,), dtype=jnp.float32)
    run_mean = 0.1 * jax.random.normal(k[5], (Cin,), dtype=jnp.float32)
    run_var = jnp.abs(1.0 + 0.1 * jax.random.normal(k[6], (Cin,), dtype=jnp.float32))
    w2 = jax.random.normal(k[7], (Cout, Cin, 1, 1), dtype=jnp.float32) * 0.05
    b2 = jnp.linspace(-0.1, 0.1, Cout, dtype=jnp.float32)

    # Case 1: N=2 -> B_blk=1, grid=(2,) parallel (one image per v7x core).
    x2 = jax.random.normal(k[0], (2, Cin, H, W), dtype=jnp.float32)
    out2 = jax.block_until_ready(
        convhead_forward(x2, w1, b1, gamma, beta, run_mean, run_var, w2, b2))
    ref2 = reference_forward(x2, w1, b1, gamma, beta, run_mean, run_var, w2, b2)
    assert out2.shape == (2, Cout, H, W)
    # bf16 MXU operands with f32 accumulation -> loosened tolerance vs pure f32.
    assert jnp.allclose(out2, ref2, atol=2e-2, rtol=2e-2), (
        float(jnp.max(jnp.abs(out2 - ref2))))

    # Case 2: N=8 -> B_blk=4, grid=(2,) — exercises the batch-folded path.
    x8 = jax.random.normal(k[0], (8, Cin, H, W), dtype=jnp.float32)
    out8 = jax.block_until_ready(
        convhead_forward(x8, w1, b1, gamma, beta, run_mean, run_var, w2, b2))
    ref8 = reference_forward(x8, w1, b1, gamma, beta, run_mean, run_var, w2, b2)
    assert out8.shape == (8, Cout, H, W)
    assert jnp.allclose(out8, ref8, atol=2e-2, rtol=2e-2), (
        float(jnp.max(jnp.abs(out8 - ref8))))

    print("KERNEL_OK")
</pallas_src>

<mosaic_0001>
module attributes {stable_mosaic.version = 11 : i64} {
  func.func @convhead_kernel(%arg0: i32, %arg1: memref<1x32x256xf32, #tpu.memory_space<vmem>>, %arg2: memref<32x288xbf16, #tpu.memory_space<vmem>>, %arg3: memref<32x1xf32, #tpu.memory_space<vmem>>, %arg4: memref<1x256xbf16, #tpu.memory_space<vmem>>, %arg5: memref<1x256xbf16, #tpu.memory_space<vmem>>, %arg6: memref<8x32xbf16, #tpu.memory_space<vmem>>, %arg7: memref<8x1xf32, #tpu.memory_space<vmem>>, %arg8: memref<1x8x256xf32, #tpu.memory_space<vmem>>, %arg9: memref<32x401xbf16, #tpu.memory_space<vmem>>, %arg10: memref<288x256xbf16, #tpu.memory_space<vmem>>) attributes {dimension_semantics = [#tpu.dimension_semantics<parallel>], iteration_bounds = array<i64: 2>, scalar_prefetch = 0 : i64, scratch_operands = 2 : i64, tpu.core_type = #tpu.core_type<tc>, window_params = [{transform_indices = @transform_0, window_bounds = array<i64: 1, 32, 256>}, {pipeline_mode = #tpu.pipeline_mode<synchronous>, transform_indices = @transform_1, window_bounds = array<i64: 32, 288>}, {pipeline_mode = #tpu.pipeline_mode<synchronous>, transform_indices = @transform_2, window_bounds = array<i64: 32, 1>}, {pipeline_mode = #tpu.pipeline_mode<synchronous>, transform_indices = @transform_3, window_bounds = array<i64: 1, 256>}, {pipeline_mode = #tpu.pipeline_mode<synchronous>, transform_indices = @transform_4, window_bounds = array<i64: 1, 256>}, {pipeline_mode = #tpu.pipeline_mode<synchronous>, transform_indices = @transform_5, window_bounds = array<i64: 8, 32>}, {pipeline_mode = #tpu.pipeline_mode<synchronous>, transform_indices = @transform_6, window_bounds = array<i64: 8, 1>}, {transform_indices = @transform_7, window_bounds = array<i64: 1, 8, 256>}]} {
    %cst = arith.constant 0.000000e+00 : bf16
    %0 = vector.broadcast %cst : bf16 to vector<32x401xbf16>
    %c0 = arith.constant 0 : index
    %c0_0 = arith.constant 0 : index
    %1 = vector.load %arg9[%c0, %c0_0] : memref<32x401xbf16, #tpu.memory_space<vmem>>, vector<32x401xbf16>
    tpu.vector_store %arg9[%c0, %c0_0], %0 {strides = array<i32>} : memref<32x401xbf16, #tpu.memory_space<vmem>>, vector<32x401xbf16>,
    %c0_1 = arith.constant 0 : index
    %c0_2 = arith.constant 0 : index
    %2 = vector.load %arg4[%c0_1, %c0_2] : memref<1x256xbf16, #tpu.memory_space<vmem>>, vector<1x256xbf16>
    %3 = vector.shape_cast %2 : vector<1x256xbf16> to vector<1x256xbf16>
    %4 = vector.broadcast %3 : vector<1x256xbf16> to vector<32x256xbf16>
    %c0_3 = arith.constant 0 : index
    %c0_4 = arith.constant 0 : index
    %5 = vector.load %arg5[%c0_3, %c0_4] : memref<1x256xbf16, #tpu.memory_space<vmem>>, vector<1x256xbf16>
    %6 = vector.shape_cast %5 : vector<1x256xbf16> to vector<1x256xbf16>
    %7 = vector.broadcast %6 : vector<1x256xbf16> to vector<32x256xbf16>
    %c0_5 = arith.constant 0 : index
    %c0_6 = arith.constant 0 : index
    %c0_7 = arith.constant 0 : index
    %8 = vector.load %arg1[%c0_5, %c0_6, %c0_7] : memref<1x32x256xf32, #tpu.memory_space<vmem>>, vector<1x32x256xf32>
    %9 = vector.shape_cast %8 : vector<1x32x256xf32> to vector<32x256xf32>
    %10 = arith.truncf %9 : vector<32x256xf32> to vector<32x256xbf16>
    %c0_8 = arith.constant 0 : index
    %c128 = arith.constant 128 : index
    %11 = vector.load %arg9[%c0_8, %c128] : memref<32x401xbf16, #tpu.memory_space<vmem>>, vector<32x256xbf16>
    tpu.vector_store %arg9[%c0_8, %c128], %10 {strides = array<i32>} : memref<32x401xbf16, #tpu.memory_space<vmem>>, vector<32x256xbf16>,
    %c0_9 = arith.constant 0 : index
    %c111 = arith.constant 111 : index
    %12 = vector.load %arg9[%c0_9, %c111] : memref<32x401xbf16, #tpu.memory_space<vmem>>, vector<32x256xbf16>
    %13 = arith.mulf %12, %4 : vector<32x256xbf16>
    %c0_10 = arith.constant 0 : index
    %c0_11 = arith.constant 0 : index
    %14 = vector.load %arg10[%c0_10, %c0_11] : memref<288x256xbf16, #tpu.memory_space<vmem>>, vector<32x256xbf16>
    tpu.vector_store %arg10[%c0_10, %c0_11], %13 {strides = array<i32>} : memref<288x256xbf16, #tpu.memory_space<vmem>>, vector<32x256xbf16>,
    %c0_12 = arith.constant 0 : index
    %c112 = arith.constant 112 : index
    %15 = vector.load %arg9[%c0_12, %c112] : memref<32x401xbf16, #tpu.memory_space<vmem>>, vector<32x256xbf16>
    %c32 = arith.constant 32 : index
    %c0_13 = arith.constant 0 : index
    %16 = vector.load %arg10[%c32, %c0_13] : memref<288x256xbf16, #tpu.memory_space<vmem>>, vector<32x256xbf16>
    tpu.vector_store %arg10[%c32, %c0_13], %15 {strides = array<i32>} : memref<288x256xbf16, #tpu.memory_space<vmem>>, vector<32x256xbf16>,
    %c0_14 = arith.constant 0 : index
    %c113 = arith.constant 113 : index
    %17 = vector.load %arg9[%c0_14, %c113] : memref<32x401xbf16, #tpu.memory_space<vmem>>, vector<32x256xbf16>
    %18 = arith.mulf %17, %7 : vector<32x256xbf16>
    %c64 = arith.constant 64 : index
    %c0_15 = arith.constant 0 : index
    %19 = vector.load %arg10[%c64, %c0_15] : memref<288x256xbf16, #tpu.memory_space<vmem>>, vector<32x256xbf16>
    tpu.vector_store %arg10[%c64, %c0_15], %18 {strides = array<i32>} : memref<288x256xbf16, #tpu.memory_space<vmem>>, vector<32x256xbf16>,
    %c0_16 = arith.constant 0 : index
    %c127 = arith.constant 127 : index
    %20 = vector.load %arg9[%c0_16, %c127] : memref<32x401xbf16, #tpu.memory_space<vmem>>, vector<32x256xbf16>
    %21 = arith.mulf %20, %4 : vector<32x256xbf16>
    %c96 = arith.constant 96 : index
    %c0_17 = arith.constant 0 : index
    %22 = vector.load %arg10[%c96, %c0_17] : memref<288x256xbf16, #tpu.memory_space<vmem>>, vector<32x256xbf16>
    tpu.vector_store %arg10[%c96, %c0_17], %21 {strides = array<i32>} : memref<288x256xbf16, #tpu.memory_space<vmem>>, vector<32x256xbf16>,
    %c0_18 = arith.constant 0 : index
    %c128_19 = arith.constant 128 : index
    %23 = vector.load %arg9[%c0_18, %c128_19] : memref<32x401xbf16, #tpu.memory_space<vmem>>, vector<32x256xbf16>
    %c128_20 = arith.constant 128 : index
    %c0_21 = arith.constant 0 : index
    %24 = vector.load %arg10[%c128_20, %c0_21] : memref<288x256xbf16, #tpu.memory_space<vmem>>, vector<32x256xbf16>
    tpu.vector_store %arg10[%c128_20, %c0_21], %23 {strides = array<i32>} : memref<288x256xbf16, #tpu.memory_space<vmem>>, vector<32x256xbf16>,
    %c0_22 = arith.constant 0 : index
    %c129 = arith.constant 129 : index
    %25 = vector.load %arg9[%c0_22, %c129] : memref<32x401xbf16, #tpu.memory_space<vmem>>, vector<32x256xbf16>
    %26 = arith.mulf %25, %7 : vector<32x256xbf16>
    %c160 = arith.constant 160 : index
    %c0_23 = arith.constant 0 : index
    %27 = vector.load %arg10[%c160, %c0_23] : memref<288x256xbf16, #tpu.memory_space<vmem>>, vector<32x256xbf16>
    tpu.vector_store %arg10[%c160, %c0_23], %26 {strides = array<i32>} : memref<288x256xbf16, #tpu.memory_space<vmem>>, vector<32x256xbf16>,
    %c0_24 = arith.constant 0 : index
    %c143 = arith.constant 143 : index
    %28 = vector.load %arg9[%c0_24, %c143] : memref<32x401xbf16, #tpu.memory_space<vmem>>, vector<32x256xbf16>
    %29 = arith.mulf %28, %4 : vector<32x256xbf16>
    %c192 = arith.constant 192 : index
    %c0_25 = arith.constant 0 : index
    %30 = vector.load %arg10[%c192, %c0_25] : memref<288x256xbf16, #tpu.memory_space<vmem>>, vector<32x256xbf16>
    tpu.vector_store %arg10[%c192, %c0_25], %29 {strides = array<i32>} : memref<288x256xbf16, #tpu.memory_space<vmem>>, vector<32x256xbf16>,
    %c0_26 = arith.constant 0 : index
    %c144 = arith.constant 144 : index
    %31 = vector.load %arg9[%c0_26, %c144] : memref<32x401xbf16, #tpu.memory_space<vmem>>, vector<32x256xbf16>
    %c224 = arith.constant 224 : index
    %c0_27 = arith.constant 0 : index
    %32 = vector.load %arg10[%c224, %c0_27] : memref<288x256xbf16, #tpu.memory_space<vmem>>, vector<32x256xbf16>
    tpu.vector_store %arg10[%c224, %c0_27], %31 {strides = array<i32>} : memref<288x256xbf16, #tpu.memory_space<vmem>>, vector<32x256xbf16>,
    %c0_28 = arith.constant 0 : index
    %c145 = arith.constant 145 : index
    %33 = vector.load %arg9[%c0_28, %c145] : memref<32x401xbf16, #tpu.memory_space<vmem>>, vector<32x256xbf16>
    %34 = arith.mulf %33, %7 : vector<32x256xbf16>
    %c256 = arith.constant 256 : index
    %c0_29 = arith.constant 0 : index
    %35 = vector.load %arg10[%c256, %c0_29] : memref<288x256xbf16, #tpu.memory_space<vmem>>, vector<32x256xbf16>
    tpu.vector_store %arg10[%c256, %c0_29], %34 {strides = array<i32>} : memref<288x256xbf16, #tpu.memory_space<vmem>>, vector<32x256xbf16>,
    %c0_30 = arith.constant 0 : index
    %c0_31 = arith.constant 0 : index
    %36 = vector.load %arg2[%c0_30, %c0_31] : memref<32x288xbf16, #tpu.memory_space<vmem>>, vector<32x288xbf16>
    %c0_32 = arith.constant 0 : index
    %c0_33 = arith.constant 0 : index
    %37 = vector.load %arg10[%c0_32, %c0_33] : memref<288x256xbf16, #tpu.memory_space<vmem>>, vector<288x256xbf16>
    %cst_34 = arith.constant dense<0.000000e+00> : vector<32x256xf32>
    %38 = tpu.matmul %36, %37, %cst_34 {dimension_numbers = #tpu.dot_dimension_numbers<[1], [0], [0], [1], [0, 0, 1, 1], [], []>} : vector<32x288xbf16>, vector<288x256xbf16>, vector<32x256xf32> -> vector<32x256xf32>
    %c0_35 = arith.constant 0 : index
    %c0_36 = arith.constant 0 : index
    %39 = vector.load %arg3[%c0_35, %c0_36] : memref<32x1xf32, #tpu.memory_space<vmem>>, vector<32x1xf32>
    %40 = vector.broadcast %39 : vector<32x1xf32> to vector<32x256xf32>
    %41 = arith.addf %38, %40 : vector<32x256xf32>
    %cst_37 = arith.constant 0.000000e+00 : f32
    %42 = vector.broadcast %cst_37 : f32 to vector<32x256xf32>
    %43 = arith.maximumf %41, %42 : vector<32x256xf32>
    %c0_38 = arith.constant 0 : index
    %c0_39 = arith.constant 0 : index
    %44 = vector.load %arg6[%c0_38, %c0_39] : memref<8x32xbf16, #tpu.memory_space<vmem>>, vector<8x32xbf16>
    %45 = arith.truncf %43 : vector<32x256xf32> to vector<32x256xbf16>
    %cst_40 = arith.constant dense<0.000000e+00> : vector<8x256xf32>
    %46 = tpu.matmul %44, %45, %cst_40 {dimension_numbers = #tpu.dot_dimension_numbers<[1], [0], [0], [1], [0, 0, 1, 1], [], []>} : vector<8x32xbf16>, vector<32x256xbf16>, vector<8x256xf32> -> vector<8x256xf32>
    %c0_41 = arith.constant 0 : index
    %c0_42 = arith.constant 0 : index
    %47 = vector.load %arg7[%c0_41, %c0_42] : memref<8x1xf32, #tpu.memory_space<vmem>>, vector<8x1xf32>
    %48 = vector.broadcast %47 : vector<8x1xf32> to vector<8x256xf32>
    %49 = arith.addf %46, %48 : vector<8x256xf32>
    %c0_43 = arith.constant 0 : index
    %c0_44 = arith.constant 0 : index
    %c0_45 = arith.constant 0 : index
    %50 = vector.load %arg8[%c0_43, %c0_44, %c0_45] : memref<1x8x256xf32, #tpu.memory_space<vmem>>, vector<1x8x256xf32>
    %51 = vector.shape_cast %50 : vector<1x8x256xf32> to vector<8x256xf32>
    %52 = vector.shape_cast %49 : vector<8x256xf32> to vector<1x8x256xf32>
    tpu.vector_store %arg8[%c0_43, %c0_44, %c0_45], %52 {strides = array<i32>} : memref<1x8x256xf32, #tpu.memory_space<vmem>>, vector<1x8x256xf32>,
    return
  }
  func.func @transform_0(%arg0: i32) -> (i32, i32, i32) {
    %c0_i32 = arith.constant 0 : i32
    %c0_i32_0 = arith.constant 0 : i32
    %c0_i32_1 = arith.constant 0 : i32
    return %arg0, %c0_i32, %c0_i32_0 : i32, i32, i32
  }
  func.func @transform_1(%arg0: i32) -> (i32, i32) {
    %c0_i32 = arith.constant 0 : i32
    %c0_i32_0 = arith.constant 0 : i32
    %c0_i32_1 = arith.constant 0 : i32
    return %c0_i32, %c0_i32_0 : i32, i32
  }
  func.func @transform_2(%arg0: i32) -> (i32, i32) {
    %c0_i32 = arith.constant 0 : i32
    %c0_i32_0 = arith.constant 0 : i32
    %c0_i32_1 = arith.constant 0 : i32
    return %c0_i32, %c0_i32_0 : i32, i32
  }
  func.func @transform_3(%arg0: i32) -> (i32, i32) {
    %c0_i32 = arith.constant 0 : i32
    %c0_i32_0 = arith.constant 0 : i32
    %c0_i32_1 = arith.constant 0 : i32
    return %c0_i32, %c0_i32_0 : i32, i32
  }
  func.func @transform_4(%arg0: i32) -> (i32, i32) {
    %c0_i32 = arith.constant 0 : i32
    %c0_i32_0 = arith.constant 0 : i32
    %c0_i32_1 = arith.constant 0 : i32
    return %c0_i32, %c0_i32_0 : i32, i32
  }
  func.func @transform_5(%arg0: i32) -> (i32, i32) {
    %c0_i32 = arith.constant 0 : i32
    %c0_i32_0 = arith.constant 0 : i32
    %c0_i32_1 = arith.constant 0 : i32
    return %c0_i32, %c0_i32_0 : i32, i32
  }
  func.func @transform_6(%arg0: i32) -> (i32, i32) {
    %c0_i32 = arith.constant 0 : i32
    %c0_i32_0 = arith.constant 0 : i32
    %c0_i32_1 = arith.constant 0 : i32
    return %c0_i32, %c0_i32_0 : i32, i32
  }
  func.func @transform_7(%arg0: i32) -> (i32, i32, i32) {
    %c0_i32 = arith.constant 0 : i32
    %c0_i32_0 = arith.constant 0 : i32
    %c0_i32_1 = arith.constant 0 : i32
    return %arg0, %c0_i32, %c0_i32_0 : i32, i32, i32
  }
}

</mosaic_0001>

<llo_original>
// kernel: convhead_forward.1
$region0: #{convhead_forward.1}
  #allocation0 [shape = 'u32[]', space=smem, size = 0x4, offset = 0x4, fixed_abs, tag = 'smem constant byte address 0x4 - core index']
  #allocation1 [shape = 'u32[72,128]{1,0:T(1,128)}', space=vmem, size = 0x9000, scoped, tag = 'internal scratch']
  #allocation2 [shape = 'bf16[32,401]{1,0:T(8,128)(2,1)}', space=vmem, size = 0x8000, scoped, tag = 'scratch operand']
  #allocation3 [shape = 'bf16[288,256]{1,0:T(8,128)(2,1)}', space=vmem, size = 0x24000, scoped, tag = 'scratch operand']
  %s0 = inlined_call_operand.vmem [shape: f32[2,32,256], index: 0, kind: input, shape index: {}]
  %s1 = inlined_call_operand.vmem [shape: bf16[32,288], index: 1, kind: input, shape index: {}]
  %s2 = inlined_call_operand.vmem [shape: f32[32,1], index: 2, kind: input, shape index: {}]
  %s3 = inlined_call_operand.vmem [shape: bf16[1,256], index: 3, kind: input, shape index: {}]
  %s4 = inlined_call_operand.vmem [shape: bf16[1,256], index: 4, kind: input, shape index: {}]
  %s5 = inlined_call_operand.vmem [shape: bf16[8,32], index: 5, kind: input, shape index: {}]
  %s6 = inlined_call_operand.vmem [shape: f32[8,1], index: 6, kind: input, shape index: {}]
  %s7 = inlined_call_operand.vmem [shape: f32[2,8,256], index: 7, kind: output, shape index: {}]
  %s8 = sld [smem:[#allocation0]]
  $region61: #{convhead_forward.1} parent=0
    _
  %s10 = ssub.s32 1, %s8
  %s11 = scalar_select 0, %s10, %s8
  loop: start=0, step=1, limit=4
  $region2: #{convhead_forward.1} parent=0 // loop_pre_header
    _
  $region3: #{convhead_forward.1} parent=0 // loop_header
    %s13 = sphi 0, %s17
    %p14 = scmp.ge.s32.totalorder %s13, 4
    %s23 = sphi 0, %s25
    %s26 = sphi 0, %s23
    %s27 = sphi 0, %s26
    %s43 = sphi 0, %s27
    %s47 = sphi 0, %s47
    %s49 = sphi 0, %s47
    %s50 = sphi 0, %s49
    %s64 = sphi 0, %s50
    %s68 = sphi 0, %s68
    %s70 = sphi 0, %s68
    %s71 = sphi 0, %s70
    %s85 = sphi 0, %s71
    %s89 = sphi 0, %s89
    %s91 = sphi 0, %s89
    %s92 = sphi 0, %s91
    %s106 = sphi 0, %s92
    %s110 = sphi 0, %s110
    %s112 = sphi 0, %s110
    %s113 = sphi 0, %s112
    %s127 = sphi 0, %s113
    %s131 = sphi 0, %s131
    %s133 = sphi 0, %s131
    %s134 = sphi 0, %s133
    %s148 = sphi 0, %s134
    %s152 = sphi 0, %s152
    %s154 = sphi 0, %s152
    %s155 = sphi 0, %s154
    %s169 = sphi 0, %s155
    %s175 = sphi 0, %s177
    %s178 = sphi 0, %s175
    %s179 = sphi 0, %s178
    %s195 = sphi 0, %s179
  $region4: #{convhead_forward.1} parent=0 // loop_header_branch
    %16 = sbr.rel (%p14) target = $region8
  $region5: #{convhead_forward.1} parent=0 // loop_body
    %s18 = ssub.s32 %s13, 1
    %s19 = ssub.s32 %s13, 2
    %s20 = sadd.s32 %s13, 1
    %s21 = ssub.s32 %s13, %s20
    %p22 = scmp.eq.s32.totalorder %s21, 0
    %s24 = sadd.s32 %s23, 1
    %s25 = scalar_select %p22, %s23, %s24
    %p28 = pneg %p22
    %p29 = scmp.eq.s32.totalorder %s13, 1
    %p30 = por %p28, %p29
    %p31 = scmp.ne.s32.totalorder %s23, %s26
    %p32 = scmp.eq.s32.totalorder %s13, 0
    %p33 = por %p31, %p32
    %p34 = scmp.ne.s32.totalorder %s23, %s26
    %p35 = scmp.eq.s32.totalorder %s18, 1
    %p36 = por %p34, %p35
    %p37 = scmp.ne.s32.totalorder %s26, %s27
    %p38 = scmp.eq.s32.totalorder %s18, 0
    %p39 = por %p37, %p38
    %p40 = scmp.ne.s32.totalorder %s26, %s27
    %p41 = scmp.eq.s32.totalorder %s19, 1
    %p42 = por %p40, %p41
    %p44 = scmp.ne.s32.totalorder %s27, %s43
    %p45 = scmp.eq.s32.totalorder %s19, 0
    %p46 = por %p44, %p45
    %s48 = sadd.s32 %s47, 1
    %p51 = scmp.eq.s32.totalorder %s13, 1
    %p52 = scmp.ne.s32.totalorder %s47, %s49
    %p53 = scmp.eq.s32.totalorder %s13, 0
    %p54 = por %p52, %p53
    %p55 = scmp.ne.s32.totalorder %s47, %s49
    %p56 = scmp.eq.s32.totalorder %s18, 1
    %p57 = por %p55, %p56
    %p58 = scmp.ne.s32.totalorder %s49, %s50
    %p59 = scmp.eq.s32.totalorder %s18, 0
    %p60 = por %p58, %p59
    %p61 = scmp.ne.s32.totalorder %s49, %s50
    %p62 = scmp.eq.s32.totalorder %s19, 1
    %p63 = por %p61, %p62
    %p65 = scmp.ne.s32.totalorder %s50, %s64
    %p66 = scmp.eq.s32.totalorder %s19, 0
    %p67 = por %p65, %p66
    %s69 = sadd.s32 %s68, 1
    %p72 = scmp.eq.s32.totalorder %s13, 1
    %p73 = scmp.ne.s32.totalorder %s68, %s70
    %p74 = scmp.eq.s32.totalorder %s13, 0
    %p75 = por %p73, %p74
    %p76 = scmp.ne.s32.totalorder %s68, %s70
    %p77 = scmp.eq.s32.totalorder %s18, 1
    %p78 = por %p76, %p77
    %p79 = scmp.ne.s32.totalorder %s70, %s71
    %p80 = scmp.eq.s32.totalorder %s18, 0
    %p81 = por %p79, %p80
    %p82 = scmp.ne.s32.totalorder %s70, %s71
    %p83 = scmp.eq.s32.totalorder %s19, 1
    %p84 = por %p82, %p83
    %p86 = scmp.ne.s32.totalorder %s71, %s85
    %p87 = scmp.eq.s32.totalorder %s19, 0
    %p88 = por %p86, %p87
    %s90 = sadd.s32 %s89, 1
    %p93 = scmp.eq.s32.totalorder %s13, 1
    %p94 = scmp.ne.s32.totalorder %s89, %s91
    %p95 = scmp.eq.s32.totalorder %s13, 0
    %p96 = por %p94, %p95
    %p97 = scmp.ne.s32.totalorder %s89, %s91
    %p98 = scmp.eq.s32.totalorder %s18, 1
    %p99 = por %p97, %p98
    %p100 = scmp.ne.s32.totalorder %s91, %s92
    %p101 = scmp.eq.s32.totalorder %s18, 0
    %p102 = por %p100, %p101
    %p103 = scmp.ne.s32.totalorder %s91, %s92
    %p104 = scmp.eq.s32.totalorder %s19, 1
    %p105 = por %p103, %p104
    %p107 = scmp.ne.s32.totalorder %s92, %s106
    %p108 = scmp.eq.s32.totalorder %s19, 0
    %p109 = por %p107, %p108
    %s111 = sadd.s32 %s110, 1
    %p114 = scmp.eq.s32.totalorder %s13, 1
    %p115 = scmp.ne.s32.totalorder %s110, %s112
    %p116 = scmp.eq.s32.totalorder %s13, 0
    %p117 = por %p115, %p116
    %p118 = scmp.ne.s32.totalorder %s110, %s112
    %p119 = scmp.eq.s32.totalorder %s18, 1
    %p120 = por %p118, %p119
    %p121 = scmp.ne.s32.totalorder %s112, %s113
    %p122 = scmp.eq.s32.totalorder %s18, 0
    %p123 = por %p121, %p122
    %p124 = scmp.ne.s32.totalorder %s112, %s113
    %p125 = scmp.eq.s32.totalorder %s19, 1
    %p126 = por %p124, %p125
    %p128 = scmp.ne.s32.totalorder %s113, %s127
    %p129 = scmp.eq.s32.totalorder %s19, 0
    %p130 = por %p128, %p129
    %s132 = sadd.s32 %s131, 1
    %p135 = scmp.eq.s32.totalorder %s13, 1
    %p136 = scmp.ne.s32.totalorder %s131, %s133
    %p137 = scmp.eq.s32.totalorder %s13, 0
    %p138 = por %p136, %p137
    %p139 = scmp.ne.s32.totalorder %s131, %s133
    %p140 = scmp.eq.s32.totalorder %s18, 1
    %p141 = por %p139, %p140
    %p142 = scmp.ne.s32.totalorder %s133, %s134
    %p143 = scmp.eq.s32.totalorder %s18, 0
    %p144 = por %p142, %p143
    %p145 = scmp.ne.s32.totalorder %s133, %s134
    %p146 = scmp.eq.s32.totalorder %s19, 1
    %p147 = por %p145, %p146
    %p149 = scmp.ne.s32.totalorder %s134, %s148
    %p150 = scmp.eq.s32.totalorder %s19, 0
    %p151 = por %p149, %p150
    %s153 = sadd.s32 %s152, 1
    %p156 = scmp.eq.s32.totalorder %s13, 1
    %p157 = scmp.ne.s32.totalorder %s152, %s154
    %p158 = scmp.eq.s32.totalorder %s13, 0
    %p159 = por %p157, %p158
    %p160 = scmp.ne.s32.totalorder %s152, %s154
    %p161 = scmp.eq.s32.totalorder %s18, 1
    %p162 = por %p160, %p161
    %p163 = scmp.ne.s32.totalorder %s154, %s155
    %p164 = scmp.eq.s32.totalorder %s18, 0
    %p165 = por %p163, %p164
    %p166 = scmp.ne.s32.totalorder %s154, %s155
    %p167 = scmp.eq.s32.totalorder %s19, 1
    %p168 = por %p166, %p167
    %p170 = scmp.ne.s32.totalorder %s155, %s169
    %p171 = scmp.eq.s32.totalorder %s19, 0
    %p172 = por %p170, %p171
    %s173 = ssub.s32 %s13, %s20
    %p174 = scmp.eq.s32.totalorder %s173, 0
    %s176 = sadd.s32 %s175, 1
    %s177 = scalar_select %p174, %s175, %s176
    %p180 = pneg %p174
    %p181 = scmp.eq.s32.totalorder %s13, 1
    %p182 = por %p180, %p181
    %p183 = scmp.ne.s32.totalorder %s175, %s178
    %p184 = scmp.eq.s32.totalorder %s13, 0
    %p185 = por %p183, %p184
    %p186 = scmp.ne.s32.totalorder %s175, %s178
    %p187 = scmp.eq.s32.totalorder %s18, 1
    %p188 = por %p186, %p187
    %p189 = scmp.ne.s32.totalorder %s178, %s179
    %p190 = scmp.eq.s32.totalorder %s18, 0
    %p191 = por %p189, %p190
    %p192 = scmp.ne.s32.totalorder %s178, %s179
    %p193 = scmp.eq.s32.totalorder %s19, 1
    %p194 = por %p192, %p193
    %p196 = scmp.ne.s32.totalorder %s179, %s195
    %p197 = scmp.eq.s32.totalorder %s19, 0
    %p198 = por %p196, %p197
    %p199 = scmp.le.s32.totalorder 1, %s13
    %p200 = scmp.lt.s32.totalorder %s13, 3
    %p201 = pnand %p199, %p200
    %p202 = pneg %p201
    // Predicated region
    $region9: #{convhead_forward.1} parent=5 // pred_check
      _
    $region10: #{convhead_forward.1} parent=5 // pred_check_branch
      %204 = sbr.rel (%p201) target = $region12
    $region11: #{convhead_forward.1} parent=5 // pred_region
      %s205 = ssub.s32 %s13, 1
      // Predicated region
      $region13: #{convhead_forward.1} parent=11 // pred_check
        %p206 = pneg %p60
      $region14: #{convhead_forward.1} parent=11 // pred_check_branch
        %208 = sbr.rel (%p206) target = $region16
      $region15: #{convhead_forward.1} parent=11 // pred_region
        _
      $region16: #{convhead_forward.1} parent=11 // pred_fallthru
        _
      // Predicated region
      $region17: #{convhead_forward.1} parent=11 // pred_check
        %p209 = pneg %p81
      $region18: #{convhead_forward.1} parent=11 // pred_check_branch
        %211 = sbr.rel (%p209) target = $region20
      $region19: #{convhead_forward.1} parent=11 // pred_region
        _
      $region20: #{convhead_forward.1} parent=11 // pred_fallthru
        _
      // Predicated region
      $region21: #{convhead_forward.1} parent=11 // pred_check
        %p212 = pneg %p102
      $region22: #{convhead_forward.1} parent=11 // pred_check_branch
        %214 = sbr.rel (%p212) target = $region24
      $region23: #{convhead_forward.1} parent=11 // pred_region
        _
      $region24: #{convhead_forward.1} parent=11 // pred_fallthru
        _
      // Predicated region
      $region25: #{convhead_forward.1} parent=11 // pred_check
        %p215 = pneg %p123
      $region26: #{convhead_forward.1} parent=11 // pred_check_branch
        %217 = sbr.rel (%p215) target = $region28
      $region27: #{convhead_forward.1} parent=11 // pred_region
        _
      $region28: #{convhead_forward.1} parent=11 // pred_fallthru
        _
      // Predicated region
      $region29: #{convhead_forward.1} parent=11 // pred_check
        %p218 = pneg %p144
      $region30: #{convhead_forward.1} parent=11 // pred_check_branch
        %220 = sbr.rel (%p218) target = $region32
      $region31: #{convhead_forward.1} parent=11 // pred_region
        _
      $region32: #{convhead_forward.1} parent=11 // pred_fallthru
        _
      // Predicated region
      $region33: #{convhead_forward.1} parent=11 // pred_check
        %p221 = pneg %p165
      $region34: #{convhead_forward.1} parent=11 // pred_check_branch
        %223 = sbr.rel (%p221) target = $region36
      $region35: #{convhead_forward.1} parent=11 // pred_region
        _
      $region36: #{convhead_forward.1} parent=11 // pred_fallthru
        _
    $region12: #{convhead_forward.1} parent=5 // pred_fallthru
      _
    %p224 = scmp.lt.s32.totalorder %s13, 2
    // Predicated region
    $region37: #{convhead_forward.1} parent=5 // pred_check
      %p225 = pneg %p224
    $region38: #{convhead_forward.1} parent=5 // pred_check_branch
      %227 = sbr.rel (%p225) target = $region40
    $region39: #{convhead_forward.1} parent=5 // pred_region
      // Predicated region
      $region41: #{convhead_forward.1} parent=39 // pred_check
        %p228 = pneg %p33
      $region42: #{convhead_forward.1} parent=39 // pred_check_branch
        %230 = sbr.rel (%p228) target = $region44
      $region43: #{convhead_forward.1} parent=39 // pred_region
        %p231 = scmp.lt.s32.totalorder %s13, 1
        %s232 = scalar_select %p231, %s13, 1
        %s233 = smul.addr %s232, 8
        %s234 = smul.addr %s233, 8
        %s235 = scalar_lea.vmem %s0, %s234
      $region44: #{convhead_forward.1} parent=39 // pred_fallthru
        _
    $region40: #{convhead_forward.1} parent=5 // pred_fallthru
      _
    %p236 = scmp.le.s32.totalorder 1, %s13
    %p237 = scmp.lt.s32.totalorder %s13, 3
    %p238 = pnand %p236, %p237
    %p239 = pneg %p238
    // Predicated region
    $region45: #{convhead_forward.1} parent=5 // pred_check
      _
    $region46: #{convhead_forward.1} parent=5 // pred_check_branch
      %241 = sbr.rel (%p238) target = $region48
    $region47: #{convhead_forward.1} parent=5 // pred_region
      %s242 = ssub.s32 %s13, 1
      %p243 = scmp.lt.s32.totalorder %s18, 1
      %s244 = scalar_select %p243, %s18, 1
      %s245 = smul.addr %s244, 8
      %s246 = smul.addr %s245, 8
      %s247 = scalar_lea.vmem %s0, %s246
      %p248 = pneg %p39
      %p249 = pneg %p36
      %p250 = pneg %p60
      %p251 = pneg %p57
      %p252 = pneg %p81
      %p253 = pneg %p78
      %p254 = pneg %p102
      %p255 = pneg %p99
      %p256 = pneg %p123
      %p257 = pneg %p120
      %p258 = pneg %p144
      %p259 = pneg %p141
      %p260 = pneg %p165
      %p261 = pneg %p162
      %p262 = pneg %p191
      %p263 = pneg %p188
      %p264 = scmp.lt.s32.totalorder %s18, 1
      %s265 = scalar_select %p264, %s18, 1
      %s266 = smul.addr %s265, 2
      %s267 = smul.addr %s266, 8
      %s268 = scalar_lea.vmem %s7, %s267
      %p269 = scmp.lt.s32.totalorder %s18, 1
      %s270 = scalar_select %p269, %s18, 1
      %s271 = smul.addr %s270, 8
      %s272 = smul.addr %s271, 8
      %s273 = scalar_lea.vmem %s0, %s272
      %p274 = scmp.lt.s32.totalorder %s18, 1
      %s275 = scalar_select %p274, %s18, 1
      %s276 = smul.addr %s275, 2
      %s277 = smul.addr %s276, 8
      %s278 = scalar_lea.vmem %s7, %s277
      %280 = vst [vmem:[#allocation2] sm:$0xff] 0
      %vm281 = vcmask 1043456
      %vm282 = vcmask 138244
      %vm283 = vmor %vm282, %vm281
      %284 = vst.msk [vmem:[#allocation2 + $0x8] sm:$0xff] %vm283, 0
      %285 = vst [vmem:[#allocation2 + $0x10] sm:$0xff] 0
      %286 = vst.msk [vmem:[#allocation2 + $0x18] sm:$0xff] %vm283, 0
      %287 = vst [vmem:[#allocation2 + $0x20] sm:$0xff] 0
      %288 = vst.msk [vmem:[#allocation2 + $0x28] sm:$0xff] %vm283, 0
      %289 = vst [vmem:[#allocation2 + $0x30] sm:$0xff] 0
      %290 = vst.msk [vmem:[#allocation2 + $0x38] sm:$0xff] %vm283, 0
      %v291 = vld [vmem:[%s3] sm:$0x3]
      %293 = vst [vmem:[#allocation1] ss:$9 sm:$0xff] %v291
      %v294 = vld [vmem:[#allocation1] sm:$0xff]
      %v295 = vld [vmem:[#allocation1 + $0x9] sm:$0xff]
      %v296 = vpack.i.b16 %v294, %v294
      %v298 = vperm.slane %v296, 0
      %v299 = vpack.i.b16 %v295, %v295
      %v301 = vperm.slane %v299, 0
      %v302 = vld [vmem:[%s4] sm:$0x3]
      %304 = vst [vmem:[#allocation1] ss:$9 sm:$0xff] %v302
      %v305 = vld [vmem:[#allocation1] sm:$0xff]
      %v306 = vld [vmem:[#allocation1 + $0x9] sm:$0xff]
      %v307 = vpack.i.b16 %v305, %v305
      %v309 = vperm.slane %v307, 0
      %v310 = vpack.i.b16 %v306, %v306
      %v312 = vperm.slane %v310, 0
      %v313 = vld [vmem:[%s273] sm:$0xff]
      %v314 = vld [vmem:[%s273 + $0x8] sm:$0xff]
      %v315 = vld [vmem:[%s273 + $0x10] sm:$0xff]
      %v316 = vld [vmem:[%s273 + $0x18] sm:$0xff]
      %v317 = vld [vmem:[%s273 + $0x20] sm:$0xff]
      %v318 = vld [vmem:[%s273 + $0x28] sm:$0xff]
      %v319 = vld [vmem:[%s273 + $0x30] sm:$0xff]
      %v320 = vld [vmem:[%s273 + $0x38] sm:$0xff]
      %v321 = vpack.c.bf16 %v314, %v313
      %v322 = vpack.c.bf16 %v316, %v315
      %v323 = vpack.c.bf16 %v318, %v317
      %v324 = vpack.c.bf16 %v320, %v319
      %325 = vst [vmem:[#allocation2 + $0x4] sm:$0xff] %v321
      %326 = vst [vmem:[#allocation2 + $0x14] sm:$0xff] %v322
      %327 = vst [vmem:[#allocation2 + $0x24] sm:$0xff] %v323
      %328 = vst [vmem:[#allocation2 + $0x34] sm:$0xff] %v324
      %v329 = vld [vmem:[#allocation2] sm:$0xff]
      %v330 = vld [vmem:[#allocation2 + $0x8] sm:$0xf]
      %v331 = vld [vmem:[#allocation2 + $0x10] sm:$0xff]
      %v332 = vld [vmem:[#allocation2 + $0x18] sm:$0xf]
      %v333 = vld [vmem:[#allocation2 + $0x20] sm:$0xff]
      %v334 = vld [vmem:[#allocation2 + $0x28] sm:$0xf]
      %v335 = vld [vmem:[#allocation2 + $0x30] sm:$0xff]
      %v336 = vld [vmem:[#allocation2 + $0x38] sm:$0xf]
      %v337 = vunpack.c.l.bf16 %v329
      %v338 = vunpack.c.h.bf16 %v329
      %v339 = vunpack.c.l.bf16 %v330
      %v340 = vunpack.c.l.bf16 %v331
      %v341 = vunpack.c.h.bf16 %v331
      %v342 = vunpack.c.l.bf16 %v332
      %v343 = vunpack.c.l.bf16 %v333
      %v344 = vunpack.c.h.bf16 %v333
      %v345 = vunpack.c.l.bf16 %v334
      %v346 = vunpack.c.l.bf16 %v335
      %v347 = vunpack.c.h.bf16 %v335
      %v348 = vunpack.c.l.bf16 %v336
      %v349 = vunpack.c.l.bf16 %v298
      %v350 = vunpack.c.l.bf16 %v301
      %353 = vrot.lane.b32.xlu0 %v349, 111
      %v354 = vpop.permute.xlu0 %353
      %355 = vrot.lane.b32.xlu0 %v350, 111
      %v356 = vpop.permute.xlu0 %355
      %vm357 = vcmask 908288
      %v358 = vsel %vm357, %v354, %v356
      %v362 = vmul.f32 %v337, %v354
      %v363 = vmul.f32 %v338, %v358
      %v364 = vmul.f32 %v339, %v356
      %v365 = vmul.f32 %v340, %v354
      %v366 = vmul.f32 %v341, %v358
      %v367 = vmul.f32 %v342, %v356
      %v368 = vmul.f32 %v343, %v354
      %v369 = vmul.f32 %v344, %v358
      %v370 = vmul.f32 %v345, %v356
      %v371 = vmul.f32 %v346, %v354
      %v372 = vmul.f32 %v347, %v358
      %v373 = vmul.f32 %v348, %v356
      %v374 = vpack.c.bf16 %v363, %v362
      %v375 = vpack.c.bf16 %v364, %v364
      %v376 = vpack.c.bf16 %v366, %v365
      %v377 = vpack.c.bf16 %v367, %v367
      %v378 = vpack.c.bf16 %v369, %v368
      %v379 = vpack.c.bf16 %v370, %v370
      %v380 = vpack.c.bf16 %v372, %v371
      %v381 = vpack.c.bf16 %v373, %v373
      %390 = vrot.lane.b32.xlu0 %v374, 17
      %v391 = vpop.permute.xlu0 %390
      %392 = vrot.lane.b32.xlu0 %v375, 17
      %v393 = vpop.permute.xlu0 %392
      %394 = vrot.lane.b32.xlu0 %v376, 17
      %v395 = vpop.permute.xlu0 %394
      %396 = vrot.lane.b32.xlu0 %v377, 17
      %v397 = vpop.permute.xlu0 %396
      %398 = vrot.lane.b32.xlu0 %v378, 17
      %v399 = vpop.permute.xlu0 %398
      %400 = vrot.lane.b32.xlu0 %v379, 17
      %v401 = vpop.permute.xlu0 %400
      %402 = vrot.lane.b32.xlu0 %v380, 17
      %v403 = vpop.permute.xlu0 %402
      %404 = vrot.lane.b32.xlu0 %v381, 17
      %v405 = vpop.permute.xlu0 %404
      %v406 = vrot.slane %v391, 4
      %v407 = vrot.slane %v393, 4
      %v408 = vrot.slane %v395, 4
      %v409 = vrot.slane %v397, 4
      %v410 = vrot.slane %v399, 4
      %v411 = vrot.slane %v401, 4
      %v412 = vrot.slane %v403, 4
      %v413 = vrot.slane %v405, 4
      %vm414 = vcmask 1043456
      %v415 = vsel %vm414, %v406, %v407
      %vm416 = vcmask 138240
      %v417 = vsel %vm416, %v391, %v415
      %v418 = vsel %vm414, %v408, %v409
      %v419 = vsel %vm416, %v395, %v418
      %v420 = vsel %vm414, %v410, %v411
      %v421 = vsel %vm416, %v399, %v420
      %v422 = vsel %vm414, %v412, %v413
      %v423 = vsel %vm416, %v403, %v422
      %428 = vst [vmem:[#allocation3] sm:$0xff] %v417
      %429 = vst [vmem:[#allocation3 + $0x8] sm:$0xff] %v419
      %430 = vst [vmem:[#allocation3 + $0x10] sm:$0xff] %v421
      %431 = vst [vmem:[#allocation3 + $0x18] sm:$0xff] %v423
      %v432 = vld [vmem:[#allocation2] sm:$0xff]
      %v433 = vld [vmem:[#allocation2 + $0x8] sm:$0xf]
      %v434 = vld [vmem:[#allocation2 + $0x10] sm:$0xff]
      %v435 = vld [vmem:[#allocation2 + $0x18] sm:$0xf]
      %v436 = vld [vmem:[#allocation2 + $0x20] sm:$0xff]
      %v437 = vld [vmem:[#allocation2 + $0x28] sm:$0xf]
      %v438 = vld [vmem:[#allocation2 + $0x30] sm:$0xff]
      %v439 = vld [vmem:[#allocation2 + $0x38] sm:$0xf]
      %448 = vrot.lane.b32.xlu0 %v432, 16
      %v449 = vpop.permute.xlu0 %448
      %450 = vrot.lane.b32.xlu0 %v433, 16
      %v451 = vpop.permute.xlu0 %450
      %452 = vrot.lane.b32.xlu0 %v434, 16
      %v453 = vpop.permute.xlu0 %452
      %454 = vrot.lane.b32.xlu0 %v435, 16
      %v455 = vpop.permute.xlu0 %454
      %456 = vrot.lane.b32.xlu0 %v436, 16
      %v457 = vpop.permute.xlu0 %456
      %458 = vrot.lane.b32.xlu0 %v437, 16
      %v459 = vpop.permute.xlu0 %458
      %460 = vrot.lane.b32.xlu0 %v438, 16
      %v461 = vpop.permute.xlu0 %460
      %462 = vrot.lane.b32.xlu0 %v439, 16
      %v463 = vpop.permute.xlu0 %462
      %v464 = vrot.slane %v449, 4
      %v465 = vrot.slane %v451, 4
      %v466 = vrot.slane %v453, 4
      %v467 = vrot.slane %v455, 4
      %v468 = vrot.slane %v457, 4
      %v469 = vrot.slane %v459, 4
      %v470 = vrot.slane %v461, 4
      %v471 = vrot.slane %v463, 4
      %v472 = vsel %vm414, %v464, %v465
      %vm473 = vcmask 130048
      %v474 = vsel %vm473, %v449, %v472
      %v475 = vsel %vm414, %v466, %v467
      %v476 = vsel %vm473, %v453, %v475
      %v477 = vsel %vm414, %v468, %v469
      %v478 = vsel %vm473, %v457, %v477
      %v479 = vsel %vm414, %v470, %v471
      %v480 = vsel %vm473, %v461, %v479
      %485 = vst [vmem:[#allocation3 + $0x20] sm:$0xff] %v474
      %486 = vst [vmem:[#allocation3 + $0x28] sm:$0xff] %v476
      %487 = vst [vmem:[#allocation3 + $0x30] sm:$0xff] %v478
      %488 = vst [vmem:[#allocation3 + $0x38] sm:$0xff] %v480
      %v489 = vld [vmem:[#allocation2] sm:$0xff]
      %v490 = vld [vmem:[#allocation2 + $0x8] sm:$0xf]
      %v491 = vld [vmem:[#allocation2 + $0x10] sm:$0xff]
      %v492 = vld [vmem:[#allocation2 + $0x18] sm:$0xf]
      %v493 = vld [vmem:[#allocation2 + $0x20] sm:$0xff]
      %v494 = vld [vmem:[#allocation2 + $0x28] sm:$0xf]
      %v495 = vld [vmem:[#allocation2 + $0x30] sm:$0xff]
      %v496 = vld [vmem:[#allocation2 + $0x38] sm:$0xf]
      %v497 = vunpack.c.l.bf16 %v489
      %v498 = vunpack.c.h.bf16 %v489
      %v499 = vunpack.c.l.bf16 %v490
      %v500 = vunpack.c.l.bf16 %v491
      %v501 = vunpack.c.h.bf16 %v491
      %v502 = vunpack.c.l.bf16 %v492
      %v503 = vunpack.c.l.bf16 %v493
      %v504 = vunpack.c.h.bf16 %v493
      %v505 = vunpack.c.l.bf16 %v494
      %v506 = vunpack.c.l.bf16 %v495
      %v507 = vunpack.c.h.bf16 %v495
      %v508 = vunpack.c.l.bf16 %v496
      %v509 = vunpack.c.l.bf16 %v309
      %v510 = vunpack.c.l.bf16 %v312
      %513 = vrot.lane.b32.xlu0 %v509, 113
      %v514 = vpop.permute.xlu0 %513
      %515 = vrot.lane.b32.xlu0 %v510, 113
      %v516 = vpop.permute.xlu0 %515
      %vm517 = vcmask 924672
      %v518 = vsel %vm517, %v514, %v516
      %v522 = vmul.f32 %v497, %v514
      %v523 = vmul.f32 %v498, %v518
      %v524 = vmul.f32 %v499, %v516
      %v525 = vmul.f32 %v500, %v514
      %v526 = vmul.f32 %v501, %v518
      %v527 = vmul.f32 %v502, %v516
      %v528 = vmul.f32 %v503, %v514
      %v529 = vmul.f32 %v504, %v518
      %v530 = vmul.f32 %v505, %v516
      %v531 = vmul.f32 %v506, %v514
      %v532 = vmul.f32 %v507, %v518
      %v533 = vmul.f32 %v508, %v516
      %v534 = vpack.c.bf16 %v523, %v522
      %v535 = vpack.c.bf16 %v524, %v524
      %v536 = vpack.c.bf16 %v526, %v525
      %v537 = vpack.c.bf16 %v527, %v527
      %v538 = vpack.c.bf16 %v529, %v528
      %v539 = vpack.c.bf16 %v530, %v530
      %v540 = vpack.c.bf16 %v532, %v531
      %v541 = vpack.c.bf16 %v533, %v533
      %550 = vrot.lane.b32.xlu0 %v534, 15
      %v551 = vpop.permute.xlu0 %550
      %552 = vrot.lane.b32.xlu0 %v535, 15
      %v553 = vpop.permute.xlu0 %552
      %554 = vrot.lane.b32.xlu0 %v536, 15
      %v555 = vpop.permute.xlu0 %554
      %556 = vrot.lane.b32.xlu0 %v537, 15
      %v557 = vpop.permute.xlu0 %556
      %558 = vrot.lane.b32.xlu0 %v538, 15
      %v559 = vpop.permute.xlu0 %558
      %560 = vrot.lane.b32.xlu0 %v539, 15
      %v561 = vpop.permute.xlu0 %560
      %562 = vrot.lane.b32.xlu0 %v540, 15
      %v563 = vpop.permute.xlu0 %562
      %564 = vrot.lane.b32.xlu0 %v541, 15
      %v565 = vpop.permute.xlu0 %564
      %v566 = vrot.slane %v551, 4
      %v567 = vrot.slane %v553, 4
      %v568 = vrot.slane %v555, 4
      %v569 = vrot.slane %v557, 4
      %v570 = vrot.slane %v559, 4
      %v571 = vrot.slane %v561, 4
      %v572 = vrot.slane %v563, 4
      %v573 = vrot.slane %v565, 4
      %v574 = vsel %vm414, %v566, %v567
      %vm575 = vcmask 121856
      %v576 = vsel %vm575, %v551, %v574
      %v577 = vsel %vm414, %v568, %v569
      %v578 = vsel %vm575, %v555, %v577
      %v579 = vsel %vm414, %v570, %v571
      %v580 = vsel %vm575, %v559, %v579
      %v581 = vsel %vm414, %v572, %v573
      %v582 = vsel %vm575, %v563, %v581
      %587 = vst [vmem:[#allocation3 + $0x40] sm:$0xff] %v576
      %588 = vst [vmem:[#allocation3 + $0x48] sm:$0xff] %v578
      %589 = vst [vmem:[#allocation3 + $0x50] sm:$0xff] %v580
      %590 = vst [vmem:[#allocation3 + $0x58] sm:$0xff] %v582
      %v591 = vld [vmem:[#allocation2] sm:$0xff]
      %v592 = vld [vmem:[#allocation2 + $0x8] sm:$0xf]
      %v593 = vld [vmem:[#allocation2 + $0x10] sm:$0xff]
      %v594 = vld [vmem:[#allocation2 + $0x18] sm:$0xf]
      %v595 = vld [vmem:[#allocation2 + $0x20] sm:$0xff]
      %v596 = vld [vmem:[#allocation2 + $0x28] sm:$0xf]
      %v597 = vld [vmem:[#allocation2 + $0x30] sm:$0xff]
      %v598 = vld [vmem:[#allocation2 + $0x38] sm:$0xf]
      %v599 = vunpack.c.l.bf16 %v591
      %v600 = vunpack.c.h.bf16 %v591
      %v601 = vunpack.c.l.bf16 %v592
      %v602 = vunpack.c.l.bf16 %v593
      %v603 = vunpack.c.h.bf16 %v593
      %v604 = vunpack.c.l.bf16 %v594
      %v605 = vunpack.c.l.bf16 %v595
      %v606 = vunpack.c.h.bf16 %v595
      %v607 = vunpack.c.l.bf16 %v596
      %v608 = vunpack.c.l.bf16 %v597
      %v609 = vunpack.c.h.bf16 %v597
      %v610 = vunpack.c.l.bf16 %v598
      %611 = vrot.lane.b32.xlu0 %v349, 127
      %v612 = vpop.permute.xlu0 %611
      %613 = vrot.lane.b32.xlu0 %v350, 127
      %v614 = vpop.permute.xlu0 %613
      %vm615 = vcmask 1039360
      %v616 = vsel %vm615, %v612, %v614
      %v620 = vmul.f32 %v599, %v612
      %v621 = vmul.f32 %v600, %v616
      %v622 = vmul.f32 %v601, %v614
      %v623 = vmul.f32 %v602, %v612
      %v624 = vmul.f32 %v603, %v616
      %v625 = vmul.f32 %v604, %v614
      %v626 = vmul.f32 %v605, %v612
      %v627 = vmul.f32 %v606, %v616
      %v628 = vmul.f32 %v607, %v614
      %v629 = vmul.f32 %v608, %v612
      %v630 = vmul.f32 %v609, %v616
      %v631 = vmul.f32 %v610, %v614
      %v632 = vpack.c.bf16 %v621, %v620
      %v633 = vpack.c.bf16 %v622, %v622
      %v634 = vpack.c.bf16 %v624, %v623
      %v635 = vpack.c.bf16 %v625, %v625
      %v636 = vpack.c.bf16 %v627, %v626
      %v637 = vpack.c.bf16 %v628, %v628
      %v638 = vpack.c.bf16 %v630, %v629
      %v639 = vpack.c.bf16 %v631, %v631
      %648 = vrot.lane.b32.xlu0 %v632, 1
      %v649 = vpop.permute.xlu0 %648
      %650 = vrot.lane.b32.xlu0 %v633, 1
      %v651 = vpop.permute.xlu0 %650
      %652 = vrot.lane.b32.xlu0 %v634, 1
      %v653 = vpop.permute.xlu0 %652
      %654 = vrot.lane.b32.xlu0 %v635, 1
      %v655 = vpop.permute.xlu0 %654
      %656 = vrot.lane.b32.xlu0 %v636, 1
      %v657 = vpop.permute.xlu0 %656
      %658 = vrot.lane.b32.xlu0 %v637, 1
      %v659 = vpop.permute.xlu0 %658
      %660 = vrot.lane.b32.xlu0 %v638, 1
      %v661 = vpop.permute.xlu0 %660
      %662 = vrot.lane.b32.xlu0 %v639, 1
      %v663 = vpop.permute.xlu0 %662
      %v664 = vrot.slane %v649, 4
      %v665 = vrot.slane %v651, 4
      %v666 = vrot.slane %v653, 4
      %v667 = vrot.slane %v655, 4
      %v668 = vrot.slane %v657, 4
      %v669 = vrot.slane %v659, 4
      %v670 = vrot.slane %v661, 4
      %v671 = vrot.slane %v663, 4
      %v672 = vsel %vm414, %v664, %v665
      %vm673 = vcmask 7168
      %v674 = vsel %vm673, %v649, %v672
      %v675 = vsel %vm414, %v666, %v667
      %v676 = vsel %vm673, %v653, %v675
      %v677 = vsel %vm414, %v668, %v669
      %v678 = vsel %vm673, %v657, %v677
      %v679 = vsel %vm414, %v670, %v671
      %v680 = vsel %vm673, %v661, %v679
      %685 = vst [vmem:[#allocation3 + $0x60] sm:$0xff] %v674
      %686 = vst [vmem:[#allocation3 + $0x68] sm:$0xff] %v676
      %687 = vst [vmem:[#allocation3 + $0x70] sm:$0xff] %v678
      %688 = vst [vmem:[#allocation3 + $0x78] sm:$0xff] %v680
      %v689 = vld [vmem:[#allocation2 + $0x4] sm:$0xff]
      %v690 = vld [vmem:[#allocation2 + $0x14] sm:$0xff]
      %v691 = vld [vmem:[#allocation2 + $0x24] sm:$0xff]
      %v692 = vld [vmem:[#allocation2 + $0x34] sm:$0xff]
      %693 = vst [vmem:[#allocation3 + $0x80] sm:$0xff] %v689
      %694 = vst [vmem:[#allocation3 + $0x88] sm:$0xff] %v690
      %695 = vst [vmem:[#allocation3 + $0x90] sm:$0xff] %v691
      %696 = vst [vmem:[#allocation3 + $0x98] sm:$0xff] %v692
      %v697 = vld [vmem:[#allocation2 + $0x4] sm:$0xff]
      %v698 = vld [vmem:[#allocation2 + $0xc] sm:$0xf]
      %v699 = vld [vmem:[#allocation2 + $0x14] sm:$0xff]
      %v700 = vld [vmem:[#allocation2 + $0x1c] sm:$0xf]
      %v701 = vld [vmem:[#allocation2 + $0x24] sm:$0xff]
      %v702 = vld [vmem:[#allocation2 + $0x2c] sm:$0xf]
      %v703 = vld [vmem:[#allocation2 + $0x34] sm:$0xff]
      %v704 = vld [vmem:[#allocation2 + $0x3c] sm:$0xf]
      %v705 = vunpack.c.l.bf16 %v697
      %v706 = vunpack.c.h.bf16 %v697
      %v707 = vunpack.c.l.bf16 %v698
      %v708 = vunpack.c.l.bf16 %v699
      %v709 = vunpack.c.h.bf16 %v699
      %v710 = vunpack.c.l.bf16 %v700
      %v711 = vunpack.c.l.bf16 %v701
      %v712 = vunpack.c.h.bf16 %v701
      %v713 = vunpack.c.l.bf16 %v702
      %v714 = vunpack.c.l.bf16 %v703
      %v715 = vunpack.c.h.bf16 %v703
      %v716 = vunpack.c.l.bf16 %v704
      %717 = vrot.lane.b32.xlu0 %v509, 1
      %v718 = vpop.permute.xlu0 %717
      %719 = vrot.lane.b32.xlu0 %v510, 1
      %v720 = vpop.permute.xlu0 %719
      %vm721 = vcmask 7168
      %v722 = vsel %vm721, %v718, %v720
      %v726 = vmul.f32 %v705, %v718
      %v727 = vmul.f32 %v706, %v722
      %v728 = vmul.f32 %v707, %v720
      %v729 = vmul.f32 %v708, %v718
      %v730 = vmul.f32 %v709, %v722
      %v731 = vmul.f32 %v710, %v720
      %v732 = vmul.f32 %v711, %v718
      %v733 = vmul.f32 %v712, %v722
      %v734 = vmul.f32 %v713, %v720
      %v735 = vmul.f32 %v714, %v718
      %v736 = vmul.f32 %v715, %v722
      %v737 = vmul.f32 %v716, %v720
      %v738 = vpack.c.bf16 %v727, %v726
      %v739 = vpack.c.bf16 %v728, %v728
      %v740 = vpack.c.bf16 %v730, %v729
      %v741 = vpack.c.bf16 %v731, %v731
      %v742 = vpack.c.bf16 %v733, %v732
      %v743 = vpack.c.bf16 %v734, %v734
      %v744 = vpack.c.bf16 %v736, %v735
      %v745 = vpack.c.bf16 %v737, %v737
      %754 = vrot.lane.b32.xlu0 %v738, 127
      %v755 = vpop.permute.xlu0 %754
      %756 = vrot.lane.b32.xlu0 %v739, 127
      %v757 = vpop.permute.xlu0 %756
      %758 = vrot.lane.b32.xlu0 %v740, 127
      %v759 = vpop.permute.xlu0 %758
      %760 = vrot.lane.b32.xlu0 %v741, 127
      %v761 = vpop.permute.xlu0 %760
      %762 = vrot.lane.b32.xlu0 %v742, 127
      %v763 = vpop.permute.xlu0 %762
      %764 = vrot.lane.b32.xlu0 %v743, 127
      %v765 = vpop.permute.xlu0 %764
      %766 = vrot.lane.b32.xlu0 %v744, 127
      %v767 = vpop.permute.xlu0 %766
      %768 = vrot.lane.b32.xlu0 %v745, 127
      %v769 = vpop.permute.xlu0 %768
      %v770 = vrot.slane %v755, 4
      %v771 = vrot.slane %v757, 4
      %v772 = vrot.slane %v759, 4
      %v773 = vrot.slane %v761, 4
      %v774 = vrot.slane %v763, 4
      %v775 = vrot.slane %v765, 4
      %v776 = vrot.slane %v767, 4
      %v777 = vrot.slane %v769, 4
      %v778 = vsel %vm414, %v770, %v771
      %vm779 = vcmask 1039360
      %v780 = vsel %vm779, %v755, %v778
      %v781 = vsel %vm414, %v772, %v773
      %v782 = vsel %vm779, %v759, %v781
      %v783 = vsel %vm414, %v774, %v775
      %v784 = vsel %vm779, %v763, %v783
      %v785 = vsel %vm414, %v776, %v777
      %v786 = vsel %vm779, %v767, %v785
      %791 = vst [vmem:[#allocation3 + $0xa0] sm:$0xff] %v780
      %792 = vst [vmem:[#allocation3 + $0xa8] sm:$0xff] %v782
      %793 = vst [vmem:[#allocation3 + $0xb0] sm:$0xff] %v784
      %794 = vst [vmem:[#allocation3 + $0xb8] sm:$0xff] %v786
      %v795 = vld [vmem:[#allocation2 + $0x4] sm:$0xff]
      %v796 = vld [vmem:[#allocation2 + $0xc] sm:$0xf]
      %v797 = vld [vmem:[#allocation2 + $0x14] sm:$0xff]
      %v798 = vld [vmem:[#allocation2 + $0x1c] sm:$0xf]
      %v799 = vld [vmem:[#allocation2 + $0x24] sm:$0xff]
      %v800 = vld [vmem:[#allocation2 + $0x2c] sm:$0xf]
      %v801 = vld [vmem:[#allocation2 + $0x34] sm:$0xff]
      %v802 = vld [vmem:[#allocation2 + $0x3c] sm:$0xf]
      %v803 = vunpack.c.l.bf16 %v795
      %v804 = vunpack.c.h.bf16 %v795
      %v805 = vunpack.c.l.bf16 %v796
      %v806 = vunpack.c.l.bf16 %v797
      %v807 = vunpack.c.h.bf16 %v797
      %v808 = vunpack.c.l.bf16 %v798
      %v809 = vunpack.c.l.bf16 %v799
      %v810 = vunpack.c.h.bf16 %v799
      %v811 = vunpack.c.l.bf16 %v800
      %v812 = vunpack.c.l.bf16 %v801
      %v813 = vunpack.c.h.bf16 %v801
      %v814 = vunpack.c.l.bf16 %v802
      %815 = vrot.lane.b32.xlu0 %v349, 15
      %v816 = vpop.permute.xlu0 %815
      %817 = vrot.lane.b32.xlu0 %v350, 15
      %v818 = vpop.permute.xlu0 %817
      %vm819 = vcmask 121856
      %v820 = vsel %vm819, %v816, %v818
      %v824 = vmul.f32 %v803, %v816
      %v825 = vmul.f32 %v804, %v820
      %v826 = vmul.f32 %v805, %v818
      %v827 = vmul.f32 %v806, %v816
      %v828 = vmul.f32 %v807, %v820
      %v829 = vmul.f32 %v808, %v818
      %v830 = vmul.f32 %v809, %v816
      %v831 = vmul.f32 %v810, %v820
      %v832 = vmul.f32 %v811, %v818
      %v833 = vmul.f32 %v812, %v816
      %v834 = vmul.f32 %v813, %v820
      %v835 = vmul.f32 %v814, %v818
      %v836 = vpack.c.bf16 %v825, %v824
      %v837 = vpack.c.bf16 %v826, %v826
      %v838 = vpack.c.bf16 %v828, %v827
      %v839 = vpack.c.bf16 %v829, %v829
      %v840 = vpack.c.bf16 %v831, %v830
      %v841 = vpack.c.bf16 %v832, %v832
      %v842 = vpack.c.bf16 %v834, %v833
      %v843 = vpack.c.bf16 %v835, %v835
      %852 = vrot.lane.b32.xlu0 %v836, 113
      %v853 = vpop.permute.xlu0 %852
      %854 = vrot.lane.b32.xlu0 %v837, 113
      %v855 = vpop.permute.xlu0 %854
      %856 = vrot.lane.b32.xlu0 %v838, 113
      %v857 = vpop.permute.xlu0 %856
      %858 = vrot.lane.b32.xlu0 %v839, 113
      %v859 = vpop.permute.xlu0 %858
      %860 = vrot.lane.b32.xlu0 %v840, 113
      %v861 = vpop.permute.xlu0 %860
      %862 = vrot.lane.b32.xlu0 %v841, 113
      %v863 = vpop.permute.xlu0 %862
      %864 = vrot.lane.b32.xlu0 %v842, 113
      %v865 = vpop.permute.xlu0 %864
      %866 = vrot.lane.b32.xlu0 %v843, 113
      %v867 = vpop.permute.xlu0 %866
      %v868 = vrot.slane %v853, 4
      %v869 = vrot.slane %v855, 4
      %v870 = vrot.slane %v857, 4
      %v871 = vrot.slane %v859, 4
      %v872 = vrot.slane %v861, 4
      %v873 = vrot.slane %v863, 4
      %v874 = vrot.slane %v865, 4
      %v875 = vrot.slane %v867, 4
      %v876 = vsel %vm414, %v868, %v869
      %vm877 = vcmask 924672
      %v878 = vsel %vm877, %v853, %v876
      %v879 = vsel %vm414, %v870, %v871
      %v880 = vsel %vm877, %v857, %v879
      %v881 = vsel %vm414, %v872, %v873
      %v882 = vsel %vm877, %v861, %v881
      %v883 = vsel %vm414, %v874, %v875
      %v884 = vsel %vm877, %v865, %v883
      %889 = vst [vmem:[#allocation3 + $0xc0] sm:$0xff] %v878
      %890 = vst [vmem:[#allocation3 + $0xc8] sm:$0xff] %v880
      %891 = vst [vmem:[#allocation3 + $0xd0] sm:$0xff] %v882
      %892 = vst [vmem:[#allocation3 + $0xd8] sm:$0xff] %v884
      %v893 = vld [vmem:[#allocation2 + $0x4] sm:$0xff]
      %v894 = vld [vmem:[#allocation2 + $0xc] sm:$0xf]
      %v895 = vld [vmem:[#allocation2 + $0x14] sm:$0xff]
      %v896 = vld [vmem:[#allocation2 + $0x1c] sm:$0xf]
      %v897 = vld [vmem:[#allocation2 + $0x24] sm:$0xff]
      %v898 = vld [vmem:[#allocation2 + $0x2c] sm:$0xf]
      %v899 = vld [vmem:[#allocation2 + $0x34] sm:$0xff]
      %v900 = vld [vmem:[#allocation2 + $0x3c] sm:$0xf]
      %909 = vrot.lane.b32.xlu0 %v893, 112
      %v910 = vpop.permute.xlu0 %909
      %911 = vrot.lane.b32.xlu0 %v894, 112
      %v912 = vpop.permute.xlu0 %911
      %913 = vrot.lane.b32.xlu0 %v895, 112
      %v914 = vpop.permute.xlu0 %913
      %915 = vrot.lane.b32.xlu0 %v896, 112
      %v916 = vpop.permute.xlu0 %915
      %917 = vrot.lane.b32.xlu0 %v897, 112
      %v918 = vpop.permute.xlu0 %917
      %919 = vrot.lane.b32.xlu0 %v898, 112
      %v920 = vpop.permute.xlu0 %919
      %921 = vrot.lane.b32.xlu0 %v899, 112
      %v922 = vpop.permute.xlu0 %921
      %923 = vrot.lane.b32.xlu0 %v900, 112
      %v924 = vpop.permute.xlu0 %923
      %v925 = vrot.slane %v910, 4
      %v926 = vrot.slane %v912, 4
      %v927 = vrot.slane %v914, 4
      %v928 = vrot.slane %v916, 4
      %v929 = vrot.slane %v918, 4
      %v930 = vrot.slane %v920, 4
      %v931 = vrot.slane %v922, 4
      %v932 = vrot.slane %v924, 4
      %v933 = vsel %vm414, %v925, %v926
      %vm934 = vcmask 916480
      %v935 = vsel %vm934, %v910, %v933
      %v936 = vsel %vm414, %v927, %v928
      %v937 = vsel %vm934, %v914, %v936
      %v938 = vsel %vm414, %v929, %v930
      %v939 = vsel %vm934, %v918, %v938
      %v940 = vsel %vm414, %v931, %v932
      %v941 = vsel %vm934, %v922, %v940
      %946 = vst [vmem:[#allocation3 + $0xe0] sm:$0xff] %v935
      %947 = vst [vmem:[#allocation3 + $0xe8] sm:$0xff] %v937
      %948 = vst [vmem:[#allocation3 + $0xf0] sm:$0xff] %v939
      %949 = vst [vmem:[#allocation3 + $0xf8] sm:$0xff] %v941
      %v950 = vld [vmem:[#allocation2 + $0x4] sm:$0xff]
      %v951 = vld [vmem:[#allocation2 + $0xc] sm:$0xf]
      %v952 = vld [vmem:[#allocation2 + $0x14] sm:$0xff]
      %v953 = vld [vmem:[#allocation2 + $0x1c] sm:$0xf]
      %v954 = vld [vmem:[#allocation2 + $0x24] sm:$0xff]
      %v955 = vld [vmem:[#allocation2 + $0x2c] sm:$0xf]
      %v956 = vld [vmem:[#allocation2 + $0x34] sm:$0xff]
      %v957 = vld [vmem:[#allocation2 + $0x3c] sm:$0xf]
      %v958 = vunpack.c.l.bf16 %v950
      %v959 = vunpack.c.h.bf16 %v950
      %v960 = vunpack.c.l.bf16 %v951
      %v961 = vunpack.c.l.bf16 %v952
      %v962 = vunpack.c.h.bf16 %v952
      %v963 = vunpack.c.l.bf16 %v953
      %v964 = vunpack.c.l.bf16 %v954
      %v965 = vunpack.c.h.bf16 %v954
      %v966 = vunpack.c.l.bf16 %v955
      %v967 = vunpack.c.l.bf16 %v956
      %v968 = vunpack.c.h.bf16 %v956
      %v969 = vunpack.c.l.bf16 %v957
      %970 = vrot.lane.b32.xlu0 %v509, 17
      %v971 = vpop.permute.xlu0 %970
      %972 = vrot.lane.b32.xlu0 %v510, 17
      %v973 = vpop.permute.xlu0 %972
      %vm974 = vcmask 138240
      %v975 = vsel %vm974, %v971, %v973
      %v979 = vmul.f32 %v958, %v971
      %v980 = vmul.f32 %v959, %v975
      %v981 = vmul.f32 %v960, %v973
      %v982 = vmul.f32 %v961, %v971
      %v983 = vmul.f32 %v962, %v975
      %v984 = vmul.f32 %v963, %v973
      %v985 = vmul.f32 %v964, %v971
      %v986 = vmul.f32 %v965, %v975
      %v987 = vmul.f32 %v966, %v973
      %v988 = vmul.f32 %v967, %v971
      %v989 = vmul.f32 %v968, %v975
      %v990 = vmul.f32 %v969, %v973
      %v991 = vpack.c.bf16 %v980, %v979
      %v992 = vpack.c.bf16 %v981, %v981
      %v993 = vpack.c.bf16 %v983, %v982
      %v994 = vpack.c.bf16 %v984, %v984
      %v995 = vpack.c.bf16 %v986, %v985
      %v996 = vpack.c.bf16 %v987, %v987
      %v997 = vpack.c.bf16 %v989, %v988
      %v998 = vpack.c.bf16 %v990, %v990
      %1007 = vrot.lane.b32.xlu0 %v991, 111
      %v1008 = vpop.permute.xlu0 %1007
      %1009 = vrot.lane.b32.xlu0 %v992, 111
      %v1010 = vpop.permute.xlu0 %1009
      %1011 = vrot.lane.b32.xlu0 %v993, 111
      %v1012 = vpop.permute.xlu0 %1011
      %1013 = vrot.lane.b32.xlu0 %v994, 111
      %v1014 = vpop.permute.xlu0 %1013
      %1015 = vrot.lane.b32.xlu0 %v995, 111
      %v1016 = vpop.permute.xlu0 %1015
      %1017 = vrot.lane.b32.xlu0 %v996, 111
      %v1018 = vpop.permute.xlu0 %1017
      %1019 = vrot.lane.b32.xlu0 %v997, 111
      %v1020 = vpop.permute.xlu0 %1019
      %1021 = vrot.lane.b32.xlu0 %v998, 111
      %v1022 = vpop.permute.xlu0 %1021
      %v1023 = vrot.slane %v1008, 4
      %v1024 = vrot.slane %v1010, 4
      %v1025 = vrot.slane %v1012, 4
      %v1026 = vrot.slane %v1014, 4
      %v1027 = vrot.slane %v1016, 4
      %v1028 = vrot.slane %v1018, 4
      %v1029 = vrot.slane %v1020, 4
      %v1030 = vrot.slane %v1022, 4
      %v1031 = vsel %vm414, %v1023, %v1024
      %vm1032 = vcmask 908288
      %v1033 = vsel %vm1032, %v1008, %v1031
      %v1034 = vsel %vm414, %v1025, %v1026
      %v1035 = vsel %vm1032, %v1012, %v1034
      %v1036 = vsel %vm414, %v1027, %v1028
      %v1037 = vsel %vm1032, %v1016, %v1036
      %v1038 = vsel %vm414, %v1029, %v1030
      %v1039 = vsel %vm1032, %v1020, %v1038
      %1044 = vst [vmem:[#allocation3 + $0x100] sm:$0xff] %v1033
      %1045 = vst [vmem:[#allocation3 + $0x108] sm:$0xff] %v1035
      %1046 = vst [vmem:[#allocation3 + $0x110] sm:$0xff] %v1037
      %1047 = vst [vmem:[#allocation3 + $0x118] sm:$0xff] %v1039
      %v1048 = vld [vmem:[%s1] sm:$0xff]
      %v1049 = vld [vmem:[%s1 + $0x8] sm:$0xf]
      %v1050 = vld [vmem:[%s1 + $0xc] sm:$0xff]
      %v1051 = vld [vmem:[%s1 + $0x14] sm:$0xf]
      %v1052 = vld [vmem:[%s1 + $0x18] sm:$0xff]
      %v1053 = vld [vmem:[%s1 + $0x20] sm:$0xf]
      %v1054 = vld [vmem:[%s1 + $0x24] sm:$0xff]
      %v1055 = vld [vmem:[%s1 + $0x2c] sm:$0xf]
      %v1056 = vld [vmem:[#allocation3] sm:$0xff]
      %v1057 = vld [vmem:[#allocation3 + $0x8] sm:$0xff]
      %v1058 = vld [vmem:[#allocation3 + $0x10] sm:$0xff]
      %v1059 = vld [vmem:[#allocation3 + $0x18] sm:$0xff]
      %v1060 = vld [vmem:[#allocation3 + $0x20] sm:$0xff]
      %v1061 = vld [vmem:[#allocation3 + $0x28] sm:$0xff]
      %v1062 = vld [vmem:[#allocation3 + $0x30] sm:$0xff]
      %v1063 = vld [vmem:[#allocation3 + $0x38] sm:$0xff]
      %v1064 = vld [vmem:[#allocation3 + $0x40] sm:$0xff]
      %v1065 = vld [vmem:[#allocation3 + $0x48] sm:$0xff]
      %v1066 = vld [vmem:[#allocation3 + $0x50] sm:$0xff]
      %v1067 = vld [vmem:[#allocation3 + $0x58] sm:$0xff]
      %v1068 = vld [vmem:[#allocation3 + $0x60] sm:$0xff]
      %v1069 = vld [vmem:[#allocation3 + $0x68] sm:$0xff]
      %v1070 = vld [vmem:[#allocation3 + $0x70] sm:$0xff]
      %v1071 = vld [vmem:[#allocation3 + $0x78] sm:$0xff]
      %v1072 = vld [vmem:[#allocation3 + $0x80] sm:$0xff]
      %v1073 = vld [vmem:[#allocation3 + $0x88] sm:$0xff]
      %v1074 = vld [vmem:[#allocation3 + $0x90] sm:$0xff]
      %v1075 = vld [vmem:[#allocation3 + $0x98] sm:$0xff]
      %v1076 = vld [vmem:[#allocation3 + $0xa0] sm:$0xff]
      %v1077 = vld [vmem:[#allocation3 + $0xa8] sm:$0xff]
      %v1078 = vld [vmem:[#allocation3 + $0xb0] sm:$0xff]
      %v1079 = vld [vmem:[#allocation3 + $0xb8] sm:$0xff]
      %v1080 = vld [vmem:[#allocation3 + $0xc0] sm:$0xff]
      %v1081 = vld [vmem:[#allocation3 + $0xc8] sm:$0xff]
      %v1082 = vld [vmem:[#allocation3 + $0xd0] sm:$0xff]
      %v1083 = vld [vmem:[#allocation3 + $0xd8] sm:$0xff]
      %v1084 = vld [vmem:[#allocation3 + $0xe0] sm:$0xff]
      %v1085 = vld [vmem:[#allocation3 + $0xe8] sm:$0xff]
      %v1086 = vld [vmem:[#allocation3 + $0xf0] sm:$0xff]
      %v1087 = vld [vmem:[#allocation3 + $0xf8] sm:$0xff]
      %v1088 = vld [vmem:[#allocation3 + $0x100] sm:$0xff]
      %v1089 = vld [vmem:[#allocation3 + $0x108] sm:$0xff]
      %v1090 = vld [vmem:[#allocation3 + $0x110] sm:$0xff]
      %v1091 = vld [vmem:[#allocation3 + $0x118] sm:$0xff]
      %v1092 = vld [vmem:[%s2] sm:$0xff]
      %v1093 = vld [vmem:[%s2 + $0x8] sm:$0xff]
      %v1094 = vld [vmem:[%s2 + $0x10] sm:$0xff]
      %v1095 = vld [vmem:[%s2 + $0x18] sm:$0xff]
      %1097 = vset.pattern.permute.xlu0 0
      %1098 = vperm.xlu0 %1097, %v1092
      %v1099 = vpop.permute.xlu0 %1098
      %1102 = vset.pattern.permute.xlu0 0
      %1103 = vperm.xlu0 %1102, %v1093
      %v1104 = vpop.permute.xlu0 %1103
      %1107 = vset.pattern.permute.xlu0 0
      %1108 = vperm.xlu0 %1107, %v1094
      %v1109 = vpop.permute.xlu0 %1108
      %1112 = vset.pattern.permute.xlu0 0
      %1113 = vperm.xlu0 %1112, %v1095
      %v1114 = vpop.permute.xlu0 %1113
      %v1124 = vunpack.c.l.b16 %v1048
      %v1125 = vunpack.c.h.b16 %v1048
      %v1126 = vunpack.c.l.b16 %v1049
      %v1127 = vunpack.c.l.b16 %v1050
      %v1128 = vunpack.c.h.b16 %v1050
      %v1129 = vunpack.c.l.b16 %v1051
      %v1130 = vunpack.c.l.b16 %v1052
      %v1131 = vunpack.c.h.b16 %v1052
      %v1132 = vunpack.c.l.b16 %v1053
      %v1133 = vunpack.c.l.b16 %v1054
      %v1134 = vunpack.c.h.b16 %v1054
      %v1135 = vunpack.c.l.b16 %v1055
      %v1136 = vpack.c.b16 %v1127, %v1124
      %v1137 = vpack.c.b16 %v1128, %v1125
      %v1138 = vpack.c.b16 %v1129, %v1126
      %v1139 = vpack.c.b16 %v1133, %v1130
      %v1140 = vpack.c.b16 %v1134, %v1131
      %v1141 = vpack.c.b16 %v1135, %v1132
      %v1182 = vunpack.c.l.b16 %v1056
      %v1183 = vunpack.c.h.b16 %v1056
      %v1184 = vunpack.c.l.b16 %v1057
      %v1185 = vunpack.c.h.b16 %v1057
      %v1186 = vunpack.c.l.b16 %v1058
      %v1187 = vunpack.c.h.b16 %v1058
      %v1188 = vunpack.c.l.b16 %v1059
      %v1189 = vunpack.c.h.b16 %v1059
      %v1190 = vunpack.c.l.b16 %v1060
      %v1191 = vunpack.c.h.b16 %v1060
      %v1192 = vunpack.c.l.b16 %v1061
      %v1193 = vunpack.c.h.b16 %v1061
      %v1194 = vunpack.c.l.b16 %v1062
      %v1195 = vunpack.c.h.b16 %v1062
      %v1196 = vunpack.c.l.b16 %v1063
      %v1197 = vunpack.c.h.b16 %v1063
      %v1198 = vunpack.c.l.b16 %v1064
      %v1199 = vunpack.c.h.b16 %v1064
      %v1200 = vunpack.c.l.b16 %v1065
      %v1201 = vunpack.c.h.b16 %v1065
      %v1202 = vunpack.c.l.b16 %v1066
      %v1203 = vunpack.c.h.b16 %v1066
      %v1204 = vunpack.c.l.b16 %v1067
      %v1205 = vunpack.c.h.b16 %v1067
      %v1206 = vunpack.c.l.b16 %v1068
      %v1207 = vunpack.c.h.b16 %v1068
      %v1208 = vunpack.c.l.b16 %v1069
      %v1209 = vunpack.c.h.b16 %v1069
      %v1210 = vunpack.c.l.b16 %v1070
      %v1211 = vunpack.c.h.b16 %v1070
      %v1212 = vunpack.c.l.b16 %v1071
      %v1213 = vunpack.c.h.b16 %v1071
      %v1214 = vunpack.c.l.b16 %v1072
      %v1215 = vunpack.c.h.b16 %v1072
      %v1216 = vunpack.c.l.b16 %v1073
      %v1217 = vunpack.c.h.b16 %v1073
      %v1218 = vunpack.c.l.b16 %v1074
      %v1219 = vunpack.c.h.b16 %v1074
      %v1220 = vunpack.c.l.b16 %v1075
      %v1221 = vunpack.c.h.b16 %v1075
      %v1222 = vunpack.c.l.b16 %v1076
      %v1223 = vunpack.c.h.b16 %v1076
      %v1224 = vunpack.c.l.b16 %v1077
      %v1225 = vunpack.c.h.b16 %v1077
      %v1226 = vunpack.c.l.b16 %v1078
      %v1227 = vunpack.c.h.b16 %v1078
      %v1228 = vunpack.c.l.b16 %v1079
      %v1229 = vunpack.c.h.b16 %v1079
      %v1230 = vunpack.c.l.b16 %v1080
      %v1231 = vunpack.c.h.b16 %v1080
      %v1232 = vunpack.c.l.b16 %v1081
      %v1233 = vunpack.c.h.b16 %v1081
      %v1234 = vunpack.c.l.b16 %v1082
      %v1235 = vunpack.c.h.b16 %v1082
      %v1236 = vunpack.c.l.b16 %v1083
      %v1237 = vunpack.c.h.b16 %v1083
      %v1238 = vunpack.c.l.b16 %v1084
      %v1239 = vunpack.c.h.b16 %v1084
      %v1240 = vunpack.c.l.b16 %v1085
      %v1241 = vunpack.c.h.b16 %v1085
      %v1242 = vunpack.c.l.b16 %v1086
      %v1243 = vunpack.c.h.b16 %v1086
      %v1244 = vunpack.c.l.b16 %v1087
      %v1245 = vunpack.c.h.b16 %v1087
      %v1246 = vunpack.c.l.b16 %v1088
      %v1247 = vunpack.c.h.b16 %v1088
      %v1248 = vunpack.c.l.b16 %v1089
      %v1249 = vunpack.c.h.b16 %v1089
      %v1250 = vunpack.c.l.b16 %v1090
      %v1251 = vunpack.c.h.b16 %v1090
      %v1252 = vunpack.c.l.b16 %v1091
      %v1253 = vunpack.c.h.b16 %v1091
      %v1254 = vpack.c.b16 %v1184, %v1182
      %v1255 = vpack.c.b16 %v1185, %v1183
      %v1256 = vpack.c.b16 %v1188, %v1186
      %v1257 = vpack.c.b16 %v1189, %v1187
      %v1258 = vpack.c.b16 %v1192, %v1190
      %v1259 = vpack.c.b16 %v1193, %v1191
      %v1260 = vpack.c.b16 %v1196, %v1194
      %v1261 = vpack.c.b16 %v1197, %v1195
      %v1262 = vpack.c.b16 %v1200, %v1198
      %v1263 = vpack.c.b16 %v1201, %v1199
      %v1264 = vpack.c.b16 %v1204, %v1202
      %v1265 = vpack.c.b16 %v1205, %v1203
      %v1266 = vpack.c.b16 %v1208, %v1206
      %v1267 = vpack.c.b16 %v1209, %v1207
      %v1268 = vpack.c.b16 %v1212, %v1210
      %v1269 = vpack.c.b16 %v1213, %v1211
      %v1270 = vpack.c.b16 %v1216, %v1214
      %v1271 = vpack.c.b16 %v1217, %v1215
      %v1272 = vpack.c.b16 %v1220, %v1218
      %v1273 = vpack.c.b16 %v1221, %v1219
      %v1274 = vpack.c.b16 %v1224, %v1222
      %v1275 = vpack.c.b16 %v1225, %v1223
      %v1276 = vpack.c.b16 %v1228, %v1226
      %v1277 = vpack.c.b16 %v1229, %v1227
      %v1278 = vpack.c.b16 %v1232, %v1230
      %v1279 = vpack.c.b16 %v1233, %v1231
      %v1280 = vpack.c.b16 %v1236, %v1234
      %v1281 = vpack.c.b16 %v1237, %v1235
      %v1282 = vpack.c.b16 %v1240, %v1238
      %v1283 = vpack.c.b16 %v1241, %v1239
      %v1284 = vpack.c.b16 %v1244, %v1242
      %v1285 = vpack.c.b16 %v1245, %v1243
      %v1286 = vpack.c.b16 %v1248, %v1246
      %v1287 = vpack.c.b16 %v1249, %v1247
      %v1288 = vpack.c.b16 %v1252, %v1250
      %v1289 = vpack.c.b16 %v1253, %v1251
      %vm1326 = vcmask 261120
      %v1328 = vsel %vm1326, %v1138, 0
      %v1331 = vsel %vm1326, %v1141, 0
      %1333 = vmatpush.bf16.msra.mxu0 %v1268
      %1334 = vmatpush.bf16.msra.mxu0 %v1266
      %1335 = vmatpush.bf16.msra.mxu0 %v1264
      %1336 = vmatpush.bf16.msra.mxu0 %v1262
      %1337 = vmatpush.bf16.msra.mxu0 %v1260
      %1338 = vmatpush.bf16.msra.mxu0 %v1258
      %1339 = vmatpush.bf16.msra.mxu0 %v1256
      %1340 = vmatpush.bf16.msra.mxu0 %v1254
      %1341 = vmatmul.bf16.gmra.mxu0 %v1136
      %v1342 = vpop.f32.mrf.mxu0
      %v1343 = vadd.f32 %v1099, %v1342
      %v1344 = vpop.f32.mrf.mxu0
      %v1345 = vadd.f32 %v1104, %v1344
      %1346 = vmatmul.bf16.gmra.mxu0 %v1139
      %v1347 = vpop.f32.mrf.mxu0
      %v1348 = vadd.f32 %v1109, %v1347
      %v1349 = vpop.f32.mrf.mxu0
      %v1350 = vadd.f32 %v1114, %v1349
      %1351 = vdwg.mxu0
      %1352 = vmatpush.bf16.msra.mxu0 %v1284
      %1353 = vmatpush.bf16.msra.mxu0 %v1282
      %1354 = vmatpush.bf16.msra.mxu0 %v1280
      %1355 = vmatpush.bf16.msra.mxu0 %v1278
      %1356 = vmatpush.bf16.msra.mxu0 %v1276
      %1357 = vmatpush.bf16.msra.mxu0 %v1274
      %1358 = vmatpush.bf16.msra.mxu0 %v1272
      %1359 = vmatpush.bf16.msra.mxu0 %v1270
      %1360 = vmatmul.bf16.gmra.mxu0 %v1137
      %v1361 = vpop.f32.mrf.mxu0
      %v1362 = vadd.f32 %v1343, %v1361
      %v1363 = vpop.f32.mrf.mxu0
      %v1364 = vadd.f32 %v1345, %v1363
      %1365 = vmatmul.bf16.gmra.mxu0 %v1140
      %v1366 = vpop.f32.mrf.mxu0
      %v1367 = vadd.f32 %v1348, %v1366
      %v1368 = vpop.f32.mrf.mxu0
      %v1369 = vadd.f32 %v1350, %v1368
      %1370 = vdwg.mxu0
      %1371 = vmatpush.bf16.msra.mxu0 0
      %1372 = vmatpush.bf16.msra.mxu0 0
      %1373 = vmatpush.bf16.msra.mxu0 0
      %1374 = vmatpush.bf16.msra.mxu0 0
      %1375 = vmatpush.bf16.msra.mxu0 0
      %1376 = vmatpush.bf16.msra.mxu0 0
      %1377 = vmatpush.bf16.msra.mxu0 %v1288
      %1378 = vmatpush.bf16.msra.mxu0 %v1286
      %1379 = vmatmul.bf16.gmra.mxu0 %v1328
      %v1380 = vpop.f32.mrf.mxu0
      %v1381 = vadd.f32 %v1362, %v1380
      %v1382 = vpop.f32.mrf.mxu0
      %v1383 = vadd.f32 %v1364, %v1382
      %1384 = vmatmul.bf16.gmra.mxu0 %v1331
      %v1385 = vpop.f32.mrf.mxu0
      %v1386 = vadd.f32 %v1367, %v1385
      %v1387 = vpop.f32.mrf.mxu0
      %v1388 = vadd.f32 %v1369, %v1387
      %1389 = vdwg.mxu0
      %1390 = vmatpush.bf16.msra.mxu0 %v1269
      %1391 = vmatpush.bf16.msra.mxu0 %v1267
      %1392 = vmatpush.bf16.msra.mxu0 %v1265
      %1393 = vmatpush.bf16.msra.mxu0 %v1263
      %1394 = vmatpush.bf16.msra.mxu0 %v1261
      %1395 = vmatpush.bf16.msra.mxu0 %v1259
      %1396 = vmatpush.bf16.msra.mxu0 %v1257
      %1397 = vmatpush.bf16.msra.mxu0 %v1255
      %1398 = vmatmul.bf16.gmra.mxu0 %v1136
      %v1399 = vpop.f32.mrf.mxu0
      %v1400 = vadd.f32 %v1099, %v1399
      %v1401 = vpop.f32.mrf.mxu0
      %v1402 = vadd.f32 %v1104, %v1401
      %1403 = vmatmul.bf16.gmra.mxu0 %v1139
      %v1404 = vpop.f32.mrf.mxu0
      %v1405 = vadd.f32 %v1109, %v1404
      %v1406 = vpop.f32.mrf.mxu0
      %v1407 = vadd.f32 %v1114, %v1406
      %1408 = vdwg.mxu0
      %1409 = vmatpush.bf16.msra.mxu0 %v1285
      %1410 = vmatpush.bf16.msra.mxu0 %v1283
      %1411 = vmatpush.bf16.msra.mxu0 %v1281
      %1412 = vmatpush.bf16.msra.mxu0 %v1279
      %1413 = vmatpush.bf16.msra.mxu0 %v1277
      %1414 = vmatpush.bf16.msra.mxu0 %v1275
      %1415 = vmatpush.bf16.msra.mxu0 %v1273
      %1416 = vmatpush.bf16.msra.mxu0 %v1271
      %1417 = vmatmul.bf16.gmra.mxu0 %v1137
      %v1418 = vpop.f32.mrf.mxu0
      %v1419 = vadd.f32 %v1400, %v1418
      %v1420 = vpop.f32.mrf.mxu0
      %v1421 = vadd.f32 %v1402, %v1420
      %1422 = vmatmul.bf16.gmra.mxu0 %v1140
      %v1423 = vpop.f32.mrf.mxu0
      %v1424 = vadd.f32 %v1405, %v1423
      %v1425 = vpop.f32.mrf.mxu0
      %v1426 = vadd.f32 %v1407, %v1425
      %1427 = vdwg.mxu0
      %1428 = vmatpush.bf16.msra.mxu0 0
      %1429 = vmatpush.bf16.msra.mxu0 0
      %1430 = vmatpush.bf16.msra.mxu0 0
      %1431 = vmatpush.bf16.msra.mxu0 0
      %1432 = vmatpush.bf16.msra.mxu0 0
      %1433 = vmatpush.bf16.msra.mxu0 0
      %1434 = vmatpush.bf16.msra.mxu0 %v1289
      %1435 = vmatpush.bf16.msra.mxu0 %v1287
      %1436 = vmatmul.bf16.gmra.mxu0 %v1328
      %v1437 = vpop.f32.mrf.mxu0
      %v1438 = vadd.f32 %v1419, %v1437
      %v1439 = vpop.f32.mrf.mxu0
      %v1440 = vadd.f32 %v1421, %v1439
      %1441 = vmatmul.bf16.gmra.mxu0 %v1331
      %v1442 = vpop.f32.mrf.mxu0
      %v1443 = vadd.f32 %v1424, %v1442
      %v1444 = vpop.f32.mrf.mxu0
      %v1445 = vadd.f32 %v1426, %v1444
      %1446 = vdwg.mxu0
      %v1447 = vmax.f32 %v1381, 0.0
      %v1448 = vmax.f32 %v1438, 0.0
      %v1449 = vmax.f32 %v1383, 0.0
      %v1450 = vmax.f32 %v1440, 0.0
      %v1451 = vmax.f32 %v1386, 0.0
      %v1452 = vmax.f32 %v1443, 0.0
      %v1453 = vmax.f32 %v1388, 0.0
      %v1454 = vmax.f32 %v1445, 0.0
      %v1455 = vld [vmem:[%s5] sm:$0xf]
      %v1456 = vpack.c.bf16 %v1449, %v1447
      %v1457 = vpack.c.bf16 %v1450, %v1448
      %v1458 = vpack.c.bf16 %v1453, %v1451
      %v1459 = vpack.c.bf16 %v1454, %v1452
      %v1460 = vld [vmem:[%s6] sm:$0xff]
      %1462 = vset.pattern.permute.xlu0 0
      %1463 = vperm.xlu0 %1462, %v1460
      %v1464 = vpop.permute.xlu0 %1463
      %v1467 = vsel %vm1326, %v1455, 0
      %1469 = vmatpush.bf16.msra.mxu0 0
      %1470 = vmatpush.bf16.msra.mxu0 0
      %1471 = vmatpush.bf16.msra.mxu0 0
      %1472 = vmatpush.bf16.msra.mxu0 0
      %1473 = vmatpush.bf16.msra.mxu0 0
      %1474 = vmatpush.bf16.msra.mxu0 0
      %1475 = vmatpush.bf16.msra.mxu0 %v1458
      %1476 = vmatpush.bf16.msra.mxu0 %v1456
      %1477 = vmatmul.bf16.gmra.mxu0 %v1467
      %v1478 = vpop.f32.mrf.mxu0
      %v1479 = vadd.f32 %v1464, %v1478
      %v1480 = vpop.f32.mrf.mxu0
      %1481 = vdwg.mxu0
      %1482 = vmatpush.bf16.msra.mxu0 0
      %1483 = vmatpush.bf16.msra.mxu0 0
      %1484 = vmatpush.bf16.msra.mxu0 0
      %1485 = vmatpush.bf16.msra.mxu0 0
      %1486 = vmatpush.bf16.msra.mxu0 0
      %1487 = vmatpush.bf16.msra.mxu0 0
      %1488 = vmatpush.bf16.msra.mxu0 %v1459
      %1489 = vmatpush.bf16.msra.mxu0 %v1457
      %1490 = vmatmul.bf16.gmra.mxu0 %v1467
      %v1491 = vpop.f32.mrf.mxu0
      %v1492 = vadd.f32 %v1464, %v1491
      %v1493 = vpop.f32.mrf.mxu0
      %1494 = vdwg.mxu0
      %1495 = vst [vmem:[%s278] sm:$0xff] %v1479
      %1496 = vst [vmem:[%s278 + $0x8] sm:$0xff] %v1492
      %p1497 = scmp.lt.s32.totalorder %s18, 1
      %s1498 = scalar_select %p1497, %s18, 1
      %s1499 = smul.addr %s1498, 2
      %s1500 = smul.addr %s1499, 8
      %s1501 = scalar_lea.vmem %s7, %s1500
      // Predicated region
      $region49: #{convhead_forward.1} parent=47 // pred_check
        %p1502 = pneg %p188
      $region50: #{convhead_forward.1} parent=47 // pred_check_branch
        %1504 = sbr.rel (%p1502) target = $region52
      $region51: #{convhead_forward.1} parent=47 // pred_region
        _
      $region52: #{convhead_forward.1} parent=47 // pred_fallthru
        _
    $region48: #{convhead_forward.1} parent=5 // pred_fallthru
      _
    %p1505 = scmp.le.s32.totalorder 2, %s13
    // Predicated region
    $region53: #{convhead_forward.1} parent=5 // pred_check
      %p1506 = pneg %p1505
    $region54: #{convhead_forward.1} parent=5 // pred_check_branch
      %1508 = sbr.rel (%p1506) target = $region56
    $region55: #{convhead_forward.1} parent=5 // pred_region
      %s1509 = ssub.s32 %s13, 2
      // Predicated region
      $region57: #{convhead_forward.1} parent=55 // pred_check
        %p1510 = pneg %p194
      $region58: #{convhead_forward.1} parent=55 // pred_check_branch
        %1512 = sbr.rel (%p1510) target = $region60
      $region59: #{convhead_forward.1} parent=55 // pred_region
        %p1513 = scmp.lt.s32.totalorder %s19, 1
        %s1514 = scalar_select %p1513, %s19, 1
        %s1515 = smul.addr %s1514, 2
        %s1516 = smul.addr %s1515, 8
        %s1517 = scalar_lea.vmem %s7, %s1516
      $region60: #{convhead_forward.1} parent=55 // pred_fallthru
        _
    $region56: #{convhead_forward.1} parent=5 // pred_fallthru
      _
  $region6: #{convhead_forward.1} parent=0 // loop_footer
    %s17 = sadd.s32 1, %s13
  $region7: #{convhead_forward.1} parent=0 // loop_footer_branch
    %12 = sbr.rel target = $region3
  $region8: #{convhead_forward.1} parent=0 // loop_exit
    _

</llo_original>
